<compile_context>
chip_gen: v5e
topology: v5e:2x2
jax: 0.10.0
libtpu: 0.0.40
codegen_flags: <defaults>
</compile_context>

<pallas_src>
import jax
import jax.numpy as jnp
from jax.experimental import pallas as pl
from jax.experimental.pallas import tpu as pltpu

# ----- model hyper-params (small, consistent with the module) -----
B, T, D = 2, 8, 32           # batch, seq len, in_dim (= emb_dim)
NUM_HEADS = 4
HEAD_DIM = D // NUM_HEADS
FFN = 64                     # dim_feedforward
NUM_LAYERS = 2
LN_EPS = 1e-5
N_TOK = B * T                # flattened tokens

# ----- packed-parameter slab layout (per layer): (P_ROWS, P_COLS) f32 -----
P_COLS = 128                 # one full lane tile (weights occupy cols [0, 96))
R_WQKV = 0                   # rows [0, D)        : Wqkv (D, 3D), blocked Q|K|V
R_WO   = D                   # rows [D, 2D)       : Wo   (D, D)   (cols 0:D)
R_W1   = 2 * D               # rows [2D, 3D)      : W1   (D, FFN) (cols 0:FFN)
R_W2   = 3 * D               # rows [3D, 3D+FFN)  : W2   (FFN, D) (cols 0:D)
R_VEC  = 3 * D + FFN         # 8 rows of biases / LN params
P_ROWS = R_VEC + 8           # 168


def _layernorm(x, g, b):
    mu = jnp.mean(x, axis=-1, keepdims=True)
    var = jnp.mean((x - mu) ** 2, axis=-1, keepdims=True)   # biased var (PyTorch LN)
    return (x - mu) * jax.lax.rsqrt(var + LN_EPS) * g + b


# --------------------------- fused stack kernel ---------------------------
def fused_encoder_kernel(x_ref, p_ref, out_ref, vals_ref):
    scale = 1.0 / (HEAD_DIM ** 0.5)
    x = x_ref[...].astype(jnp.float32)                      # (B*T, D)

    for l in range(NUM_LAYERS):                             # static unroll (L = 2)
        # ---- unpack this layer's parameters (static ref slices) ----
        wqkv = p_ref[l, R_WQKV:R_WQKV + D, 0:3 * D]          # (D, 3D)  blocked Q|K|V
        wo   = p_ref[l, R_WO:R_WO + D, 0:D]                  # (D, D)
        w1   = p_ref[l, R_W1:R_W1 + D, 0:FFN]                # (D, FFN)
        w2   = p_ref[l, R_W2:R_W2 + FFN, 0:D]                # (FFN, D)
        bqkv = p_ref[l, R_VEC + 0:R_VEC + 1, 0:3 * D]        # (1, 3D)
        bo   = p_ref[l, R_VEC + 1:R_VEC + 2, 0:D]            # (1, D)
        b1_  = p_ref[l, R_VEC + 2:R_VEC + 3, 0:FFN]          # (1, FFN)
        b2_  = p_ref[l, R_VEC + 3:R_VEC + 4, 0:D]            # (1, D)
        ln1g = p_ref[l, R_VEC + 4:R_VEC + 5, 0:D]
        ln1b = p_ref[l, R_VEC + 5:R_VEC + 6, 0:D]
        ln2g = p_ref[l, R_VEC + 6:R_VEC + 7, 0:D]
        ln2b = p_ref[l, R_VEC + 7:R_VEC + 8, 0:D]

        # ---- QKV projection (single matmul) ----
        qkv = jnp.dot(x, wqkv, preferred_element_type=jnp.float32) + bqkv   # (B*T, 3D)

        # ---- attention: static (batch, head) loop, 2-D dots on lane-offset
        #      views of qkv; head outputs written directly into their column
        #      block of the (B*T, D) VMEM scratch (no stack / concat merge) ----
        for b in range(B):
            r0 = b * T                                       # sublane-aligned (T = 8)
            for h in range(NUM_HEADS):
                c0 = h * HEAD_DIM
                q = qkv[r0:r0 + T, c0:c0 + HEAD_DIM]                     # (T, hd)
                k = qkv[r0:r0 + T, D + c0:D + c0 + HEAD_DIM]             # (T, hd)
                v = qkv[r0:r0 + T, 2 * D + c0:2 * D + c0 + HEAD_DIM]     # (T, hd)

                s = jax.lax.dot_general(                                 # q @ k^T
                    q, k, (((1,), (1,)), ((), ())),
                    preferred_element_type=jnp.float32) * scale          # (T, T)
                s = s - jnp.max(s, axis=-1, keepdims=True)
                e = jnp.exp(s)
                a = e / jnp.sum(e, axis=-1, keepdims=True)               # exact softmax
                vals_ref[r0:r0 + T, c0:c0 + HEAD_DIM] = jnp.dot(
                    a, v, preferred_element_type=jnp.float32)            # (T, hd)

        vals = vals_ref[...]                                             # (B*T, D)
        attn_out = jnp.dot(vals, wo, preferred_element_type=jnp.float32) + bo

        # ---- residual + LayerNorm 1 ----
        x1 = _layernorm(x + attn_out, ln1g, ln1b)

        # ---- feed-forward (Linear -> ReLU -> Linear) ----
        h1 = jnp.maximum(
            jnp.dot(x1, w1, preferred_element_type=jnp.float32) + b1_, 0.0)
        ffn_out = jnp.dot(h1, w2, preferred_element_type=jnp.float32) + b2_

        # ---- residual + LayerNorm 2 ----
        x = _layernorm(x1 + ffn_out, ln2g, ln2b)

    out_ref[...] = x.astype(out_ref.dtype)


# --------------- parameter packing (runs ONCE, outside the forward) ---------------
def _qkv_blocked_perm():
    # kernel column  part*D + h*hd + j   <-  module column  h*3*hd + part*hd + j
    # (matches the spec's qkv.reshape(B, T, H, 3*hd) per-head-interleaved layout)
    cols = [h * 3 * HEAD_DIM + part * HEAD_DIM + j
            for part in range(3) for h in range(NUM_HEADS) for j in range(HEAD_DIM)]
    return jnp.array(cols, dtype=jnp.int32)


def pack_layer_params(params):
    (wqkv, bqkv, wo, bo, w1, b1, w2, b2, ln1g, ln1b, ln2g, ln2b) = params
    cols = _qkv_blocked_perm()
    wqkv_b = wqkv[:, cols]                                   # (D, 3D) blocked Q|K|V
    bqkv_b = bqkv[:, cols]                                   # (1, 3D)

    def pad_cols(a):
        return jnp.pad(a, ((0, 0), (0, P_COLS - a.shape[1])))

    rows = [
        pad_cols(wqkv_b),                                    # (D, 128)
        pad_cols(wo),                                        # (D, 128)
        pad_cols(w1),                                        # (D, 128)
        pad_cols(w2),                                        # (FFN, 128)
        pad_cols(bqkv_b), pad_cols(bo), pad_cols(b1), pad_cols(b2),
        pad_cols(ln1g), pad_cols(ln1b), pad_cols(ln2g), pad_cols(ln2b),
    ]
    return jnp.concatenate(rows, axis=0)                     # (P_ROWS, P_COLS)


def pack_params(layer_params):
    """One-time packing of all layers into a single (L, P_ROWS, P_COLS) slab."""
    return jnp.stack([pack_layer_params(p) for p in layer_params], axis=0)


def _cost_estimate():
    flops_layer = (2 * N_TOK * D * 3 * D                          # QKV proj
                   + 2 * 2 * (B * NUM_HEADS) * T * T * HEAD_DIM   # attention
                   + 2 * N_TOK * D * D                            # O proj
                   + 2 * 2 * N_TOK * D * FFN)                     # FFN
    flops = NUM_LAYERS * flops_layer
    transcendentals = NUM_LAYERS * (B * NUM_HEADS * T * T + 2 * N_TOK)
    bytes_accessed = 4 * (2 * N_TOK * D + NUM_LAYERS * P_ROWS * P_COLS)
    return pl.CostEstimate(flops=flops, transcendentals=transcendentals,
                           bytes_accessed=bytes_accessed)


# ------------------------------- wrapper ----------------------------------
def transformer_encoder(x, packed):
    """Full TransformerEncoder forward in a single pallas_call.

    `packed` is the pre-packed (NUM_LAYERS, P_ROWS, P_COLS) parameter slab
    produced once by pack_params() — no packing work on the hot path.
    """
    x2d = x.reshape(N_TOK, D)

    out2d = pl.pallas_call(
        fused_encoder_kernel,
        out_shape=jax.ShapeDtypeStruct((N_TOK, D), jnp.float32),
        grid=(1,),                                           # single step, all VMEM-resident
        in_specs=[
            pl.BlockSpec((N_TOK, D), lambda i: (0, 0)),
            pl.BlockSpec((NUM_LAYERS, P_ROWS, P_COLS), lambda i: (0, 0, 0)),
        ],
        out_specs=pl.BlockSpec((N_TOK, D), lambda i: (0, 0)),
        scratch_shapes=[pltpu.VMEM((N_TOK, D), jnp.float32)],   # per-head merge buffer
        compiler_params=pltpu.CompilerParams(dimension_semantics=("arbitrary",)),
        cost_estimate=_cost_estimate(),
    )(x2d, packed)
    return out2d.reshape(B, T, D)


# ---------------- parameter init (deterministic, synthetic) ----------------
def init_layer_params(key):
    ks = jax.random.split(key, 8)
    s = 0.05
    wqkv = jax.random.normal(ks[0], (D, 3 * D), jnp.float32) * s
    bqkv = jnp.zeros((1, 3 * D), jnp.float32)
    wo = jax.random.normal(ks[1], (D, D), jnp.float32) * s
    bo = jnp.zeros((1, D), jnp.float32)
    w1 = jax.random.normal(ks[2], (D, FFN), jnp.float32) * s
    b1 = jax.random.normal(ks[3], (1, FFN), jnp.float32) * s
    w2 = jax.random.normal(ks[4], (FFN, D), jnp.float32) * s
    b2 = jax.random.normal(ks[5], (1, D), jnp.float32) * s
    ln1g = jnp.ones((1, D), jnp.float32)
    ln1b = jnp.zeros((1, D), jnp.float32)
    ln2g = jnp.ones((1, D), jnp.float32)
    ln2b = jnp.zeros((1, D), jnp.float32)
    return (wqkv, bqkv, wo, bo, w1, b1, w2, b2, ln1g, ln1b, ln2g, ln2b)


# ---------------- plain-JAX reference (PyTorch semantics) ----------------
def ref_block(x, p):
    (wqkv, bqkv, wo, bo, w1, b1, w2, b2, ln1g, ln1b, ln2g, ln2b) = p
    qkv = x @ wqkv + bqkv[0]                                 # (B, T, 3D)
    qkv = qkv.reshape(B, T, NUM_HEADS, 3 * HEAD_DIM).transpose(0, 2, 1, 3)
    q, k, v = jnp.split(qkv, 3, axis=-1)
    logits = jnp.einsum("bhqd,bhkd->bhqk", q, k) / (HEAD_DIM ** 0.5)
    attn = jax.nn.softmax(logits, axis=-1)
    vals = jnp.einsum("bhqk,bhkd->bhqd", attn, v)
    vals = vals.transpose(0, 2, 1, 3).reshape(B, T, D)
    attn_out = vals @ wo + bo[0]
    x1 = _layernorm(x + attn_out, ln1g[0], ln1b[0])
    ff = jnp.maximum(x1 @ w1 + b1[0], 0.0) @ w2 + b2[0]
    return _layernorm(x1 + ff, ln2g[0], ln2b[0])


def ref_encoder(x, layer_params):
    for p in layer_params:
        x = ref_block(x, p)
    return x


if __name__ == "__main__":
    key = jax.random.PRNGKey(0)
    kx, kp = jax.random.split(key)
    x = jax.random.normal(kx, (B, T, D), jnp.float32)
    layer_keys = jax.random.split(kp, NUM_LAYERS)
    layer_params = [init_layer_params(k) for k in layer_keys]

    # One-time parameter packing (off the hot path), jitted forward.
    packed = jax.block_until_ready(pack_params(layer_params))
    fwd = jax.jit(transformer_encoder)

    out = fwd(x, packed)
    out = jax.block_until_ready(out)

    ref = ref_encoder(x, layer_params)
    assert out.shape == (B, T, D)
    assert jnp.allclose(out, ref, rtol=2e-3, atol=2e-3), "mismatch vs reference"
    print("KERNEL_OK")
</pallas_src>

<mosaic_0001>
module attributes {stable_mosaic.version = 11 : i64} {
  func.func @fused_encoder_kernel(%arg0: i32, %arg1: memref<16x32xf32, #tpu.memory_space<vmem>>, %arg2: memref<2x168x128xf32, #tpu.memory_space<vmem>>, %arg3: memref<16x32xf32, #tpu.memory_space<vmem>>, %arg4: memref<16x32xf32, #tpu.memory_space<vmem>>) attributes {dimension_semantics = [#tpu.dimension_semantics<arbitrary>], iteration_bounds = array<i64: 1>, scalar_prefetch = 0 : i64, scratch_operands = 1 : i64, tpu.core_type = #tpu.core_type<tc>, window_params = [{pipeline_mode = #tpu.pipeline_mode<synchronous>, transform_indices = @transform_0, window_bounds = array<i64: 16, 32>}, {pipeline_mode = #tpu.pipeline_mode<synchronous>, transform_indices = @transform_1, window_bounds = array<i64: 2, 168, 128>}, {pipeline_mode = #tpu.pipeline_mode<synchronous>, transform_indices = @transform_2, window_bounds = array<i64: 16, 32>}]} {
    %c0 = arith.constant 0 : index
    %c0_0 = arith.constant 0 : index
    %0 = vector.load %arg1[%c0, %c0_0] : memref<16x32xf32, #tpu.memory_space<vmem>>, vector<16x32xf32>
    %c0_1 = arith.constant 0 : index
    %c0_2 = arith.constant 0 : index
    %c0_3 = arith.constant 0 : index
    %1 = vector.load %arg2[%c0_1, %c0_2, %c0_3] : memref<2x168x128xf32, #tpu.memory_space<vmem>>, vector<1x32x96xf32>
    %2 = vector.shape_cast %1 : vector<1x32x96xf32> to vector<32x96xf32>
    %c0_4 = arith.constant 0 : index
    %c32 = arith.constant 32 : index
    %c0_5 = arith.constant 0 : index
    %3 = vector.load %arg2[%c0_4, %c32, %c0_5] : memref<2x168x128xf32, #tpu.memory_space<vmem>>, vector<1x32x32xf32>
    %4 = vector.shape_cast %3 : vector<1x32x32xf32> to vector<32x32xf32>
    %c0_6 = arith.constant 0 : index
    %c64 = arith.constant 64 : index
    %c0_7 = arith.constant 0 : index
    %5 = vector.load %arg2[%c0_6, %c64, %c0_7] : memref<2x168x128xf32, #tpu.memory_space<vmem>>, vector<1x32x64xf32>
    %6 = vector.shape_cast %5 : vector<1x32x64xf32> to vector<32x64xf32>
    %c0_8 = arith.constant 0 : index
    %c96 = arith.constant 96 : index
    %c0_9 = arith.constant 0 : index
    %7 = vector.load %arg2[%c0_8, %c96, %c0_9] : memref<2x168x128xf32, #tpu.memory_space<vmem>>, vector<1x64x32xf32>
    %8 = vector.shape_cast %7 : vector<1x64x32xf32> to vector<64x32xf32>
    %c0_10 = arith.constant 0 : index
    %c160 = arith.constant 160 : index
    %c0_11 = arith.constant 0 : index
    %9 = vector.load %arg2[%c0_10, %c160, %c0_11] : memref<2x168x128xf32, #tpu.memory_space<vmem>>, vector<1x1x96xf32>
    %10 = vector.shape_cast %9 : vector<1x1x96xf32> to vector<1x96xf32>
    %c0_12 = arith.constant 0 : index
    %c161 = arith.constant 161 : index
    %c0_13 = arith.constant 0 : index
    %11 = vector.load %arg2[%c0_12, %c161, %c0_13] : memref<2x168x128xf32, #tpu.memory_space<vmem>>, vector<1x1x32xf32>
    %12 = vector.shape_cast %11 : vector<1x1x32xf32> to vector<1x32xf32>
    %c0_14 = arith.constant 0 : index
    %c162 = arith.constant 162 : index
    %c0_15 = arith.constant 0 : index
    %13 = vector.load %arg2[%c0_14, %c162, %c0_15] : memref<2x168x128xf32, #tpu.memory_space<vmem>>, vector<1x1x64xf32>
    %14 = vector.shape_cast %13 : vector<1x1x64xf32> to vector<1x64xf32>
    %c0_16 = arith.constant 0 : index
    %c163 = arith.constant 163 : index
    %c0_17 = arith.constant 0 : index
    %15 = vector.load %arg2[%c0_16, %c163, %c0_17] : memref<2x168x128xf32, #tpu.memory_space<vmem>>, vector<1x1x32xf32>
    %16 = vector.shape_cast %15 : vector<1x1x32xf32> to vector<1x32xf32>
    %c0_18 = arith.constant 0 : index
    %c164 = arith.constant 164 : index
    %c0_19 = arith.constant 0 : index
    %17 = vector.load %arg2[%c0_18, %c164, %c0_19] : memref<2x168x128xf32, #tpu.memory_space<vmem>>, vector<1x1x32xf32>
    %18 = vector.shape_cast %17 : vector<1x1x32xf32> to vector<1x32xf32>
    %c0_20 = arith.constant 0 : index
    %c165 = arith.constant 165 : index
    %c0_21 = arith.constant 0 : index
    %19 = vector.load %arg2[%c0_20, %c165, %c0_21] : memref<2x168x128xf32, #tpu.memory_space<vmem>>, vector<1x1x32xf32>
    %20 = vector.shape_cast %19 : vector<1x1x32xf32> to vector<1x32xf32>
    %c0_22 = arith.constant 0 : index
    %c166 = arith.constant 166 : index
    %c0_23 = arith.constant 0 : index
    %21 = vector.load %arg2[%c0_22, %c166, %c0_23] : memref<2x168x128xf32, #tpu.memory_space<vmem>>, vector<1x1x32xf32>
    %22 = vector.shape_cast %21 : vector<1x1x32xf32> to vector<1x32xf32>
    %c0_24 = arith.constant 0 : index
    %c167 = arith.constant 167 : index
    %c0_25 = arith.constant 0 : index
    %23 = vector.load %arg2[%c0_24, %c167, %c0_25] : memref<2x168x128xf32, #tpu.memory_space<vmem>>, vector<1x1x32xf32>
    %24 = vector.shape_cast %23 : vector<1x1x32xf32> to vector<1x32xf32>
    %cst = arith.constant dense<0.000000e+00> : vector<16x96xf32>
    %25 = tpu.matmul %0, %2, %cst {dimension_numbers = #tpu.dot_dimension_numbers<[1], [0], [0], [1], [0, 0, 1, 1], [], []>} : vector<16x32xf32>, vector<32x96xf32>, vector<16x96xf32> -> vector<16x96xf32>
    %26 = vector.broadcast %10 : vector<1x96xf32> to vector<16x96xf32>
    %27 = arith.addf %25, %26 : vector<16x96xf32>
    %28 = vector.extract_strided_slice %27 {offsets = [0, 0], sizes = [8, 8], strides = [1, 1]} : vector<16x96xf32> to vector<8x8xf32>
    %29 = vector.extract_strided_slice %27 {offsets = [0, 32], sizes = [8, 8], strides = [1, 1]} : vector<16x96xf32> to vector<8x8xf32>
    %30 = vector.extract_strided_slice %27 {offsets = [0, 64], sizes = [8, 8], strides = [1, 1]} : vector<16x96xf32> to vector<8x8xf32>
    %cst_26 = arith.constant dense<0.000000e+00> : vector<8x8xf32>
    %31 = tpu.matmul %28, %29, %cst_26 {dimension_numbers = #tpu.dot_dimension_numbers<[1], [1], [0], [0], [0, 0, 1, 0], [], []>} : vector<8x8xf32>, vector<8x8xf32>, vector<8x8xf32> -> vector<8x8xf32>
    %cst_27 = arith.constant 0.353553385 : f32
    %32 = vector.broadcast %cst_27 : f32 to vector<8x8xf32>
    %33 = arith.mulf %31, %32 : vector<8x8xf32>
    %cst_28 = arith.constant dense<0xFF800000> : vector<8xf32>
    %34 = vector.multi_reduction <maximumf>, %33, %cst_28 [1] : vector<8x8xf32> to vector<8xf32>
    %35 = vector.shape_cast %34 : vector<8xf32> to vector<8x1xf32>
    %36 = vector.broadcast %35 : vector<8x1xf32> to vector<8x8xf32>
    %37 = arith.subf %33, %36 : vector<8x8xf32>
    %38 = math.exp %37 : vector<8x8xf32>
    %cst_29 = arith.constant dense<0.000000e+00> : vector<8xf32>
    %39 = vector.multi_reduction <add>, %38, %cst_29 [1] : vector<8x8xf32> to vector<8xf32>
    %40 = vector.shape_cast %39 : vector<8xf32> to vector<8x1xf32>
    %41 = vector.broadcast %40 : vector<8x1xf32> to vector<8x8xf32>
    %42 = arith.divf %38, %41 : vector<8x8xf32>
    %cst_30 = arith.constant dense<0.000000e+00> : vector<8x8xf32>
    %43 = tpu.matmul %42, %30, %cst_30 {dimension_numbers = #tpu.dot_dimension_numbers<[1], [0], [0], [1], [0, 0, 1, 1], [], []>} : vector<8x8xf32>, vector<8x8xf32>, vector<8x8xf32> -> vector<8x8xf32>
    %c0_31 = arith.constant 0 : index
    %c0_32 = arith.constant 0 : index
    %44 = vector.load %arg4[%c0_31, %c0_32] : memref<16x32xf32, #tpu.memory_space<vmem>>, vector<8x8xf32>
    tpu.vector_store %arg4[%c0_31, %c0_32], %43 {strides = array<i32>} : memref<16x32xf32, #tpu.memory_space<vmem>>, vector<8x8xf32>,
    %45 = vector.extract_strided_slice %27 {offsets = [0, 8], sizes = [8, 8], strides = [1, 1]} : vector<16x96xf32> to vector<8x8xf32>
    %46 = vector.extract_strided_slice %27 {offsets = [0, 40], sizes = [8, 8], strides = [1, 1]} : vector<16x96xf32> to vector<8x8xf32>
    %47 = vector.extract_strided_slice %27 {offsets = [0, 72], sizes = [8, 8], strides = [1, 1]} : vector<16x96xf32> to vector<8x8xf32>
    %cst_33 = arith.constant dense<0.000000e+00> : vector<8x8xf32>
    %48 = tpu.matmul %45, %46, %cst_33 {dimension_numbers = #tpu.dot_dimension_numbers<[1], [1], [0], [0], [0, 0, 1, 0], [], []>} : vector<8x8xf32>, vector<8x8xf32>, vector<8x8xf32> -> vector<8x8xf32>
    %cst_34 = arith.constant 0.353553385 : f32
    %49 = vector.broadcast %cst_34 : f32 to vector<8x8xf32>
    %50 = arith.mulf %48, %49 : vector<8x8xf32>
    %cst_35 = arith.constant dense<0xFF800000> : vector<8xf32>
    %51 = vector.multi_reduction <maximumf>, %50, %cst_35 [1] : vector<8x8xf32> to vector<8xf32>
    %52 = vector.shape_cast %51 : vector<8xf32> to vector<8x1xf32>
    %53 = vector.broadcast %52 : vector<8x1xf32> to vector<8x8xf32>
    %54 = arith.subf %50, %53 : vector<8x8xf32>
    %55 = math.exp %54 : vector<8x8xf32>
    %cst_36 = arith.constant dense<0.000000e+00> : vector<8xf32>
    %56 = vector.multi_reduction <add>, %55, %cst_36 [1] : vector<8x8xf32> to vector<8xf32>
    %57 = vector.shape_cast %56 : vector<8xf32> to vector<8x1xf32>
    %58 = vector.broadcast %57 : vector<8x1xf32> to vector<8x8xf32>
    %59 = arith.divf %55, %58 : vector<8x8xf32>
    %cst_37 = arith.constant dense<0.000000e+00> : vector<8x8xf32>
    %60 = tpu.matmul %59, %47, %cst_37 {dimension_numbers = #tpu.dot_dimension_numbers<[1], [0], [0], [1], [0, 0, 1, 1], [], []>} : vector<8x8xf32>, vector<8x8xf32>, vector<8x8xf32> -> vector<8x8xf32>
    %c0_38 = arith.constant 0 : index
    %c8 = arith.constant 8 : index
    %61 = vector.load %arg4[%c0_38, %c8] : memref<16x32xf32, #tpu.memory_space<vmem>>, vector<8x8xf32>
    tpu.vector_store %arg4[%c0_38, %c8], %60 {strides = array<i32>} : memref<16x32xf32, #tpu.memory_space<vmem>>, vector<8x8xf32>,
    %62 = vector.extract_strided_slice %27 {offsets = [0, 16], sizes = [8, 8], strides = [1, 1]} : vector<16x96xf32> to vector<8x8xf32>
    %63 = vector.extract_strided_slice %27 {offsets = [0, 48], sizes = [8, 8], strides = [1, 1]} : vector<16x96xf32> to vector<8x8xf32>
    %64 = vector.extract_strided_slice %27 {offsets = [0, 80], sizes = [8, 8], strides = [1, 1]} : vector<16x96xf32> to vector<8x8xf32>
    %cst_39 = arith.constant dense<0.000000e+00> : vector<8x8xf32>
    %65 = tpu.matmul %62, %63, %cst_39 {dimension_numbers = #tpu.dot_dimension_numbers<[1], [1], [0], [0], [0, 0, 1, 0], [], []>} : vector<8x8xf32>, vector<8x8xf32>, vector<8x8xf32> -> vector<8x8xf32>
    %cst_40 = arith.constant 0.353553385 : f32
    %66 = vector.broadcast %cst_40 : f32 to vector<8x8xf32>
    %67 = arith.mulf %65, %66 : vector<8x8xf32>
    %cst_41 = arith.constant dense<0xFF800000> : vector<8xf32>
    %68 = vector.multi_reduction <maximumf>, %67, %cst_41 [1] : vector<8x8xf32> to vector<8xf32>
    %69 = vector.shape_cast %68 : vector<8xf32> to vector<8x1xf32>
    %70 = vector.broadcast %69 : vector<8x1xf32> to vector<8x8xf32>
    %71 = arith.subf %67, %70 : vector<8x8xf32>
    %72 = math.exp %71 : vector<8x8xf32>
    %cst_42 = arith.constant dense<0.000000e+00> : vector<8xf32>
    %73 = vector.multi_reduction <add>, %72, %cst_42 [1] : vector<8x8xf32> to vector<8xf32>
    %74 = vector.shape_cast %73 : vector<8xf32> to vector<8x1xf32>
    %75 = vector.broadcast %74 : vector<8x1xf32> to vector<8x8xf32>
    %76 = arith.divf %72, %75 : vector<8x8xf32>
    %cst_43 = arith.constant dense<0.000000e+00> : vector<8x8xf32>
    %77 = tpu.matmul %76, %64, %cst_43 {dimension_numbers = #tpu.dot_dimension_numbers<[1], [0], [0], [1], [0, 0, 1, 1], [], []>} : vector<8x8xf32>, vector<8x8xf32>, vector<8x8xf32> -> vector<8x8xf32>
    %c0_44 = arith.constant 0 : index
    %c16 = arith.constant 16 : index
    %78 = vector.load %arg4[%c0_44, %c16] : memref<16x32xf32, #tpu.memory_space<vmem>>, vector<8x8xf32>
    tpu.vector_store %arg4[%c0_44, %c16], %77 {strides = array<i32>} : memref<16x32xf32, #tpu.memory_space<vmem>>, vector<8x8xf32>,
    %79 = vector.extract_strided_slice %27 {offsets = [0, 24], sizes = [8, 8], strides = [1, 1]} : vector<16x96xf32> to vector<8x8xf32>
    %80 = vector.extract_strided_slice %27 {offsets = [0, 56], sizes = [8, 8], strides = [1, 1]} : vector<16x96xf32> to vector<8x8xf32>
    %81 = vector.extract_strided_slice %27 {offsets = [0, 88], sizes = [8, 8], strides = [1, 1]} : vector<16x96xf32> to vector<8x8xf32>
    %cst_45 = arith.constant dense<0.000000e+00> : vector<8x8xf32>
    %82 = tpu.matmul %79, %80, %cst_45 {dimension_numbers = #tpu.dot_dimension_numbers<[1], [1], [0], [0], [0, 0, 1, 0], [], []>} : vector<8x8xf32>, vector<8x8xf32>, vector<8x8xf32> -> vector<8x8xf32>
    %cst_46 = arith.constant 0.353553385 : f32
    %83 = vector.broadcast %cst_46 : f32 to vector<8x8xf32>
    %84 = arith.mulf %82, %83 : vector<8x8xf32>
    %cst_47 = arith.constant dense<0xFF800000> : vector<8xf32>
    %85 = vector.multi_reduction <maximumf>, %84, %cst_47 [1] : vector<8x8xf32> to vector<8xf32>
    %86 = vector.shape_cast %85 : vector<8xf32> to vector<8x1xf32>
    %87 = vector.broadcast %86 : vector<8x1xf32> to vector<8x8xf32>
    %88 = arith.subf %84, %87 : vector<8x8xf32>
    %89 = math.exp %88 : vector<8x8xf32>
    %cst_48 = arith.constant dense<0.000000e+00> : vector<8xf32>
    %90 = vector.multi_reduction <add>, %89, %cst_48 [1] : vector<8x8xf32> to vector<8xf32>
    %91 = vector.shape_cast %90 : vector<8xf32> to vector<8x1xf32>
    %92 = vector.broadcast %91 : vector<8x1xf32> to vector<8x8xf32>
    %93 = arith.divf %89, %92 : vector<8x8xf32>
    %cst_49 = arith.constant dense<0.000000e+00> : vector<8x8xf32>
    %94 = tpu.matmul %93, %81, %cst_49 {dimension_numbers = #tpu.dot_dimension_numbers<[1], [0], [0], [1], [0, 0, 1, 1], [], []>} : vector<8x8xf32>, vector<8x8xf32>, vector<8x8xf32> -> vector<8x8xf32>
    %c0_50 = arith.constant 0 : index
    %c24 = arith.constant 24 : index
    %95 = vector.load %arg4[%c0_50, %c24] : memref<16x32xf32, #tpu.memory_space<vmem>>, vector<8x8xf32>
    tpu.vector_store %arg4[%c0_50, %c24], %94 {strides = array<i32>} : memref<16x32xf32, #tpu.memory_space<vmem>>, vector<8x8xf32>,
    %96 = vector.extract_strided_slice %27 {offsets = [8, 0], sizes = [8, 8], strides = [1, 1]} : vector<16x96xf32> to vector<8x8xf32>
    %97 = vector.extract_strided_slice %27 {offsets = [8, 32], sizes = [8, 8], strides = [1, 1]} : vector<16x96xf32> to vector<8x8xf32>
    %98 = vector.extract_strided_slice %27 {offsets = [8, 64], sizes = [8, 8], strides = [1, 1]} : vector<16x96xf32> to vector<8x8xf32>
    %cst_51 = arith.constant dense<0.000000e+00> : vector<8x8xf32>
    %99 = tpu.matmul %96, %97, %cst_51 {dimension_numbers = #tpu.dot_dimension_numbers<[1], [1], [0], [0], [0, 0, 1, 0], [], []>} : vector<8x8xf32>, vector<8x8xf32>, vector<8x8xf32> -> vector<8x8xf32>
    %cst_52 = arith.constant 0.353553385 : f32
    %100 = vector.broadcast %cst_52 : f32 to vector<8x8xf32>
    %101 = arith.mulf %99, %100 : vector<8x8xf32>
    %cst_53 = arith.constant dense<0xFF800000> : vector<8xf32>
    %102 = vector.multi_reduction <maximumf>, %101, %cst_53 [1] : vector<8x8xf32> to vector<8xf32>
    %103 = vector.shape_cast %102 : vector<8xf32> to vector<8x1xf32>
    %104 = vector.broadcast %103 : vector<8x1xf32> to vector<8x8xf32>
    %105 = arith.subf %101, %104 : vector<8x8xf32>
    %106 = math.exp %105 : vector<8x8xf32>
    %cst_54 = arith.constant dense<0.000000e+00> : vector<8xf32>
    %107 = vector.multi_reduction <add>, %106, %cst_54 [1] : vector<8x8xf32> to vector<8xf32>
    %108 = vector.shape_cast %107 : vector<8xf32> to vector<8x1xf32>
    %109 = vector.broadcast %108 : vector<8x1xf32> to vector<8x8xf32>
    %110 = arith.divf %106, %109 : vector<8x8xf32>
    %cst_55 = arith.constant dense<0.000000e+00> : vector<8x8xf32>
    %111 = tpu.matmul %110, %98, %cst_55 {dimension_numbers = #tpu.dot_dimension_numbers<[1], [0], [0], [1], [0, 0, 1, 1], [], []>} : vector<8x8xf32>, vector<8x8xf32>, vector<8x8xf32> -> vector<8x8xf32>
    %c8_56 = arith.constant 8 : index
    %c0_57 = arith.constant 0 : index
    %112 = vector.load %arg4[%c8_56, %c0_57] : memref<16x32xf32, #tpu.memory_space<vmem>>, vector<8x8xf32>
    tpu.vector_store %arg4[%c8_56, %c0_57], %111 {strides = array<i32>} : memref<16x32xf32, #tpu.memory_space<vmem>>, vector<8x8xf32>,
    %113 = vector.extract_strided_slice %27 {offsets = [8, 8], sizes = [8, 8], strides = [1, 1]} : vector<16x96xf32> to vector<8x8xf32>
    %114 = vector.extract_strided_slice %27 {offsets = [8, 40], sizes = [8, 8], strides = [1, 1]} : vector<16x96xf32> to vector<8x8xf32>
    %115 = vector.extract_strided_slice %27 {offsets = [8, 72], sizes = [8, 8], strides = [1, 1]} : vector<16x96xf32> to vector<8x8xf32>
    %cst_58 = arith.constant dense<0.000000e+00> : vector<8x8xf32>
    %116 = tpu.matmul %113, %114, %cst_58 {dimension_numbers = #tpu.dot_dimension_numbers<[1], [1], [0], [0], [0, 0, 1, 0], [], []>} : vector<8x8xf32>, vector<8x8xf32>, vector<8x8xf32> -> vector<8x8xf32>
    %cst_59 = arith.constant 0.353553385 : f32
    %117 = vector.broadcast %cst_59 : f32 to vector<8x8xf32>
    %118 = arith.mulf %116, %117 : vector<8x8xf32>
    %cst_60 = arith.constant dense<0xFF800000> : vector<8xf32>
    %119 = vector.multi_reduction <maximumf>, %118, %cst_60 [1] : vector<8x8xf32> to vector<8xf32>
    %120 = vector.shape_cast %119 : vector<8xf32> to vector<8x1xf32>
    %121 = vector.broadcast %120 : vector<8x1xf32> to vector<8x8xf32>
    %122 = arith.subf %118, %121 : vector<8x8xf32>
    %123 = math.exp %122 : vector<8x8xf32>
    %cst_61 = arith.constant dense<0.000000e+00> : vector<8xf32>
    %124 = vector.multi_reduction <add>, %123, %cst_61 [1] : vector<8x8xf32> to vector<8xf32>
    %125 = vector.shape_cast %124 : vector<8xf32> to vector<8x1xf32>
    %126 = vector.broadcast %125 : vector<8x1xf32> to vector<8x8xf32>
    %127 = arith.divf %123, %126 : vector<8x8xf32>
    %cst_62 = arith.constant dense<0.000000e+00> : vector<8x8xf32>
    %128 = tpu.matmul %127, %115, %cst_62 {dimension_numbers = #tpu.dot_dimension_numbers<[1], [0], [0], [1], [0, 0, 1, 1], [], []>} : vector<8x8xf32>, vector<8x8xf32>, vector<8x8xf32> -> vector<8x8xf32>
    %c8_63 = arith.constant 8 : index
    %c8_64 = arith.constant 8 : index
    %129 = vector.load %arg4[%c8_63, %c8_64] : memref<16x32xf32, #tpu.memory_space<vmem>>, vector<8x8xf32>
    tpu.vector_store %arg4[%c8_63, %c8_64], %128 {strides = array<i32>} : memref<16x32xf32, #tpu.memory_space<vmem>>, vector<8x8xf32>,
    %130 = vector.extract_strided_slice %27 {offsets = [8, 16], sizes = [8, 8], strides = [1, 1]} : vector<16x96xf32> to vector<8x8xf32>
    %131 = vector.extract_strided_slice %27 {offsets = [8, 48], sizes = [8, 8], strides = [1, 1]} : vector<16x96xf32> to vector<8x8xf32>
    %132 = vector.extract_strided_slice %27 {offsets = [8, 80], sizes = [8, 8], strides = [1, 1]} : vector<16x96xf32> to vector<8x8xf32>
    %cst_65 = arith.constant dense<0.000000e+00> : vector<8x8xf32>
    %133 = tpu.matmul %130, %131, %cst_65 {dimension_numbers = #tpu.dot_dimension_numbers<[1], [1], [0], [0], [0, 0, 1, 0], [], []>} : vector<8x8xf32>, vector<8x8xf32>, vector<8x8xf32> -> vector<8x8xf32>
    %cst_66 = arith.constant 0.353553385 : f32
    %134 = vector.broadcast %cst_66 : f32 to vector<8x8xf32>
    %135 = arith.mulf %133, %134 : vector<8x8xf32>
    %cst_67 = arith.constant dense<0xFF800000> : vector<8xf32>
    %136 = vector.multi_reduction <maximumf>, %135, %cst_67 [1] : vector<8x8xf32> to vector<8xf32>
    %137 = vector.shape_cast %136 : vector<8xf32> to vector<8x1xf32>
    %138 = vector.broadcast %137 : vector<8x1xf32> to vector<8x8xf32>
    %139 = arith.subf %135, %138 : vector<8x8xf32>
    %140 = math.exp %139 : vector<8x8xf32>
    %cst_68 = arith.constant dense<0.000000e+00> : vector<8xf32>
    %141 = vector.multi_reduction <add>, %140, %cst_68 [1] : vector<8x8xf32> to vector<8xf32>
    %142 = vector.shape_cast %141 : vector<8xf32> to vector<8x1xf32>
    %143 = vector.broadcast %142 : vector<8x1xf32> to vector<8x8xf32>
    %144 = arith.divf %140, %143 : vector<8x8xf32>
    %cst_69 = arith.constant dense<0.000000e+00> : vector<8x8xf32>
    %145 = tpu.matmul %144, %132, %cst_69 {dimension_numbers = #tpu.dot_dimension_numbers<[1], [0], [0], [1], [0, 0, 1, 1], [], []>} : vector<8x8xf32>, vector<8x8xf32>, vector<8x8xf32> -> vector<8x8xf32>
    %c8_70 = arith.constant 8 : index
    %c16_71 = arith.constant 16 : index
    %146 = vector.load %arg4[%c8_70, %c16_71] : memref<16x32xf32, #tpu.memory_space<vmem>>, vector<8x8xf32>
    tpu.vector_store %arg4[%c8_70, %c16_71], %145 {strides = array<i32>} : memref<16x32xf32, #tpu.memory_space<vmem>>, vector<8x8xf32>,
    %147 = vector.extract_strided_slice %27 {offsets = [8, 24], sizes = [8, 8], strides = [1, 1]} : vector<16x96xf32> to vector<8x8xf32>
    %148 = vector.extract_strided_slice %27 {offsets = [8, 56], sizes = [8, 8], strides = [1, 1]} : vector<16x96xf32> to vector<8x8xf32>
    %149 = vector.extract_strided_slice %27 {offsets = [8, 88], sizes = [8, 8], strides = [1, 1]} : vector<16x96xf32> to vector<8x8xf32>
    %cst_72 = arith.constant dense<0.000000e+00> : vector<8x8xf32>
    %150 = tpu.matmul %147, %148, %cst_72 {dimension_numbers = #tpu.dot_dimension_numbers<[1], [1], [0], [0], [0, 0, 1, 0], [], []>} : vector<8x8xf32>, vector<8x8xf32>, vector<8x8xf32> -> vector<8x8xf32>
    %cst_73 = arith.constant 0.353553385 : f32
    %151 = vector.broadcast %cst_73 : f32 to vector<8x8xf32>
    %152 = arith.mulf %150, %151 : vector<8x8xf32>
    %cst_74 = arith.constant dense<0xFF800000> : vector<8xf32>
    %153 = vector.multi_reduction <maximumf>, %152, %cst_74 [1] : vector<8x8xf32> to vector<8xf32>
    %154 = vector.shape_cast %153 : vector<8xf32> to vector<8x1xf32>
    %155 = vector.broadcast %154 : vector<8x1xf32> to vector<8x8xf32>
    %156 = arith.subf %152, %155 : vector<8x8xf32>
    %157 = math.exp %156 : vector<8x8xf32>
    %cst_75 = arith.constant dense<0.000000e+00> : vector<8xf32>
    %158 = vector.multi_reduction <add>, %157, %cst_75 [1] : vector<8x8xf32> to vector<8xf32>
    %159 = vector.shape_cast %158 : vector<8xf32> to vector<8x1xf32>
    %160 = vector.broadcast %159 : vector<8x1xf32> to vector<8x8xf32>
    %161 = arith.divf %157, %160 : vector<8x8xf32>
    %cst_76 = arith.constant dense<0.000000e+00> : vector<8x8xf32>
    %162 = tpu.matmul %161, %149, %cst_76 {dimension_numbers = #tpu.dot_dimension_numbers<[1], [0], [0], [1], [0, 0, 1, 1], [], []>} : vector<8x8xf32>, vector<8x8xf32>, vector<8x8xf32> -> vector<8x8xf32>
    %c8_77 = arith.constant 8 : index
    %c24_78 = arith.constant 24 : index
    %163 = vector.load %arg4[%c8_77, %c24_78] : memref<16x32xf32, #tpu.memory_space<vmem>>, vector<8x8xf32>
    tpu.vector_store %arg4[%c8_77, %c24_78], %162 {strides = array<i32>} : memref<16x32xf32, #tpu.memory_space<vmem>>, vector<8x8xf32>,
    %c0_79 = arith.constant 0 : index
    %c0_80 = arith.constant 0 : index
    %164 = vector.load %arg4[%c0_79, %c0_80] : memref<16x32xf32, #tpu.memory_space<vmem>>, vector<16x32xf32>
    %cst_81 = arith.constant dense<0.000000e+00> : vector<16x32xf32>
    %165 = tpu.matmul %164, %4, %cst_81 {dimension_numbers = #tpu.dot_dimension_numbers<[1], [0], [0], [1], [0, 0, 1, 1], [], []>} : vector<16x32xf32>, vector<32x32xf32>, vector<16x32xf32> -> vector<16x32xf32>
    %166 = vector.broadcast %12 : vector<1x32xf32> to vector<16x32xf32>
    %167 = arith.addf %165, %166 : vector<16x32xf32>
    %168 = arith.addf %0, %167 : vector<16x32xf32>
    %cst_82 = arith.constant dense<0.000000e+00> : vector<16xf32>
    %169 = vector.multi_reduction <add>, %168, %cst_82 [1] : vector<16x32xf32> to vector<16xf32>
    %170 = vector.shape_cast %169 : vector<16xf32> to vector<16x1xf32>
    %cst_83 = arith.constant 3.200000e+01 : f32
    %171 = vector.broadcast %cst_83 : f32 to vector<16x1xf32>
    %172 = arith.divf %170, %171 : vector<16x1xf32>
    %173 = vector.broadcast %172 : vector<16x1xf32> to vector<16x32xf32>
    %174 = arith.subf %168, %173 : vector<16x32xf32>
    %175 = arith.mulf %174, %174 : vector<16x32xf32>
    %cst_84 = arith.constant dense<0.000000e+00> : vector<16xf32>
    %176 = vector.multi_reduction <add>, %175, %cst_84 [1] : vector<16x32xf32> to vector<16xf32>
    %177 = vector.shape_cast %176 : vector<16xf32> to vector<16x1xf32>
    %cst_85 = arith.constant 3.200000e+01 : f32
    %178 = vector.broadcast %cst_85 : f32 to vector<16x1xf32>
    %179 = arith.divf %177, %178 : vector<16x1xf32>
    %180 = vector.broadcast %172 : vector<16x1xf32> to vector<16x32xf32>
    %181 = arith.subf %168, %180 : vector<16x32xf32>
    %cst_86 = arith.constant 9.99999974E-6 : f32
    %182 = vector.broadcast %cst_86 : f32 to vector<16x1xf32>
    %183 = arith.addf %179, %182 : vector<16x1xf32>
    %184 = math.rsqrt %183 : vector<16x1xf32>
    %185 = vector.broadcast %184 : vector<16x1xf32> to vector<16x32xf32>
    %186 = arith.mulf %181, %185 : vector<16x32xf32>
    %187 = vector.broadcast %18 : vector<1x32xf32> to vector<16x32xf32>
    %188 = arith.mulf %186, %187 : vector<16x32xf32>
    %189 = vector.broadcast %20 : vector<1x32xf32> to vector<16x32xf32>
    %190 = arith.addf %188, %189 : vector<16x32xf32>
    %cst_87 = arith.constant dense<0.000000e+00> : vector<16x64xf32>
    %191 = tpu.matmul %190, %6, %cst_87 {dimension_numbers = #tpu.dot_dimension_numbers<[1], [0], [0], [1], [0, 0, 1, 1], [], []>} : vector<16x32xf32>, vector<32x64xf32>, vector<16x64xf32> -> vector<16x64xf32>
    %192 = vector.broadcast %14 : vector<1x64xf32> to vector<16x64xf32>
    %193 = arith.addf %191, %192 : vector<16x64xf32>
    %cst_88 = arith.constant 0.000000e+00 : f32
    %194 = vector.broadcast %cst_88 : f32 to vector<16x64xf32>
    %195 = arith.maximumf %193, %194 : vector<16x64xf32>
    %cst_89 = arith.constant dense<0.000000e+00> : vector<16x32xf32>
    %196 = tpu.matmul %195, %8, %cst_89 {dimension_numbers = #tpu.dot_dimension_numbers<[1], [0], [0], [1], [0, 0, 1, 1], [], []>} : vector<16x64xf32>, vector<64x32xf32>, vector<16x32xf32> -> vector<16x32xf32>
    %197 = vector.broadcast %16 : vector<1x32xf32> to vector<16x32xf32>
    %198 = arith.addf %196, %197 : vector<16x32xf32>
    %199 = arith.addf %190, %198 : vector<16x32xf32>
    %cst_90 = arith.constant dense<0.000000e+00> : vector<16xf32>
    %200 = vector.multi_reduction <add>, %199, %cst_90 [1] : vector<16x32xf32> to vector<16xf32>
    %201 = vector.shape_cast %200 : vector<16xf32> to vector<16x1xf32>
    %cst_91 = arith.constant 3.200000e+01 : f32
    %202 = vector.broadcast %cst_91 : f32 to vector<16x1xf32>
    %203 = arith.divf %201, %202 : vector<16x1xf32>
    %204 = vector.broadcast %203 : vector<16x1xf32> to vector<16x32xf32>
    %205 = arith.subf %199, %204 : vector<16x32xf32>
    %206 = arith.mulf %205, %205 : vector<16x32xf32>
    %cst_92 = arith.constant dense<0.000000e+00> : vector<16xf32>
    %207 = vector.multi_reduction <add>, %206, %cst_92 [1] : vector<16x32xf32> to vector<16xf32>
    %208 = vector.shape_cast %207 : vector<16xf32> to vector<16x1xf32>
    %cst_93 = arith.constant 3.200000e+01 : f32
    %209 = vector.broadcast %cst_93 : f32 to vector<16x1xf32>
    %210 = arith.divf %208, %209 : vector<16x1xf32>
    %211 = vector.broadcast %203 : vector<16x1xf32> to vector<16x32xf32>
    %212 = arith.subf %199, %211 : vector<16x32xf32>
    %cst_94 = arith.constant 9.99999974E-6 : f32
    %213 = vector.broadcast %cst_94 : f32 to vector<16x1xf32>
    %214 = arith.addf %210, %213 : vector<16x1xf32>
    %215 = math.rsqrt %214 : vector<16x1xf32>
    %216 = vector.broadcast %215 : vector<16x1xf32> to vector<16x32xf32>
    %217 = arith.mulf %212, %216 : vector<16x32xf32>
    %218 = vector.broadcast %22 : vector<1x32xf32> to vector<16x32xf32>
    %219 = arith.mulf %217, %218 : vector<16x32xf32>
    %220 = vector.broadcast %24 : vector<1x32xf32> to vector<16x32xf32>
    %221 = arith.addf %219, %220 : vector<16x32xf32>
    %c1 = arith.constant 1 : index
    %c0_95 = arith.constant 0 : index
    %c0_96 = arith.constant 0 : index
    %222 = vector.load %arg2[%c1, %c0_95, %c0_96] : memref<2x168x128xf32, #tpu.memory_space<vmem>>, vector<1x32x96xf32>
    %223 = vector.shape_cast %222 : vector<1x32x96xf32> to vector<32x96xf32>
    %c1_97 = arith.constant 1 : index
    %c32_98 = arith.constant 32 : index
    %c0_99 = arith.constant 0 : index
    %224 = vector.load %arg2[%c1_97, %c32_98, %c0_99] : memref<2x168x128xf32, #tpu.memory_space<vmem>>, vector<1x32x32xf32>
    %225 = vector.shape_cast %224 : vector<1x32x32xf32> to vector<32x32xf32>
    %c1_100 = arith.constant 1 : index
    %c64_101 = arith.constant 64 : index
    %c0_102 = arith.constant 0 : index
    %226 = vector.load %arg2[%c1_100, %c64_101, %c0_102] : memref<2x168x128xf32, #tpu.memory_space<vmem>>, vector<1x32x64xf32>
    %227 = vector.shape_cast %226 : vector<1x32x64xf32> to vector<32x64xf32>
    %c1_103 = arith.constant 1 : index
    %c96_104 = arith.constant 96 : index
    %c0_105 = arith.constant 0 : index
    %228 = vector.load %arg2[%c1_103, %c96_104, %c0_105] : memref<2x168x128xf32, #tpu.memory_space<vmem>>, vector<1x64x32xf32>
    %229 = vector.shape_cast %228 : vector<1x64x32xf32> to vector<64x32xf32>
    %c1_106 = arith.constant 1 : index
    %c160_107 = arith.constant 160 : index
    %c0_108 = arith.constant 0 : index
    %230 = vector.load %arg2[%c1_106, %c160_107, %c0_108] : memref<2x168x128xf32, #tpu.memory_space<vmem>>, vector<1x1x96xf32>
    %231 = vector.shape_cast %230 : vector<1x1x96xf32> to vector<1x96xf32>
    %c1_109 = arith.constant 1 : index
    %c161_110 = arith.constant 161 : index
    %c0_111 = arith.constant 0 : index
    %232 = vector.load %arg2[%c1_109, %c161_110, %c0_111] : memref<2x168x128xf32, #tpu.memory_space<vmem>>, vector<1x1x32xf32>
    %233 = vector.shape_cast %232 : vector<1x1x32xf32> to vector<1x32xf32>
    %c1_112 = arith.constant 1 : index
    %c162_113 = arith.constant 162 : index
    %c0_114 = arith.constant 0 : index
    %234 = vector.load %arg2[%c1_112, %c162_113, %c0_114] : memref<2x168x128xf32, #tpu.memory_space<vmem>>, vector<1x1x64xf32>
    %235 = vector.shape_cast %234 : vector<1x1x64xf32> to vector<1x64xf32>
    %c1_115 = arith.constant 1 : index
    %c163_116 = arith.constant 163 : index
    %c0_117 = arith.constant 0 : index
    %236 = vector.load %arg2[%c1_115, %c163_116, %c0_117] : memref<2x168x128xf32, #tpu.memory_space<vmem>>, vector<1x1x32xf32>
    %237 = vector.shape_cast %236 : vector<1x1x32xf32> to vector<1x32xf32>
    %c1_118 = arith.constant 1 : index
    %c164_119 = arith.constant 164 : index
    %c0_120 = arith.constant 0 : index
    %238 = vector.load %arg2[%c1_118, %c164_119, %c0_120] : memref<2x168x128xf32, #tpu.memory_space<vmem>>, vector<1x1x32xf32>
    %239 = vector.shape_cast %238 : vector<1x1x32xf32> to vector<1x32xf32>
    %c1_121 = arith.constant 1 : index
    %c165_122 = arith.constant 165 : index
    %c0_123 = arith.constant 0 : index
    %240 = vector.load %arg2[%c1_121, %c165_122, %c0_123] : memref<2x168x128xf32, #tpu.memory_space<vmem>>, vector<1x1x32xf32>
    %241 = vector.shape_cast %240 : vector<1x1x32xf32> to vector<1x32xf32>
    %c1_124 = arith.constant 1 : index
    %c166_125 = arith.constant 166 : index
    %c0_126 = arith.constant 0 : index
    %242 = vector.load %arg2[%c1_124, %c166_125, %c0_126] : memref<2x168x128xf32, #tpu.memory_space<vmem>>, vector<1x1x32xf32>
    %243 = vector.shape_cast %242 : vector<1x1x32xf32> to vector<1x32xf32>
    %c1_127 = arith.constant 1 : index
    %c167_128 = arith.constant 167 : index
    %c0_129 = arith.constant 0 : index
    %244 = vector.load %arg2[%c1_127, %c167_128, %c0_129] : memref<2x168x128xf32, #tpu.memory_space<vmem>>, vector<1x1x32xf32>
    %245 = vector.shape_cast %244 : vector<1x1x32xf32> to vector<1x32xf32>
    %cst_130 = arith.constant dense<0.000000e+00> : vector<16x96xf32>
    %246 = tpu.matmul %221, %223, %cst_130 {dimension_numbers = #tpu.dot_dimension_numbers<[1], [0], [0], [1], [0, 0, 1, 1], [], []>} : vector<16x32xf32>, vector<32x96xf32>, vector<16x96xf32> -> vector<16x96xf32>
    %247 = vector.broadcast %231 : vector<1x96xf32> to vector<16x96xf32>
    %248 = arith.addf %246, %247 : vector<16x96xf32>
    %249 = vector.extract_strided_slice %248 {offsets = [0, 0], sizes = [8, 8], strides = [1, 1]} : vector<16x96xf32> to vector<8x8xf32>
    %250 = vector.extract_strided_slice %248 {offsets = [0, 32], sizes = [8, 8], strides = [1, 1]} : vector<16x96xf32> to vector<8x8xf32>
    %251 = vector.extract_strided_slice %248 {offsets = [0, 64], sizes = [8, 8], strides = [1, 1]} : vector<16x96xf32> to vector<8x8xf32>
    %cst_131 = arith.constant dense<0.000000e+00> : vector<8x8xf32>
    %252 = tpu.matmul %249, %250, %cst_131 {dimension_numbers = #tpu.dot_dimension_numbers<[1], [1], [0], [0], [0, 0, 1, 0], [], []>} : vector<8x8xf32>, vector<8x8xf32>, vector<8x8xf32> -> vector<8x8xf32>
    %cst_132 = arith.constant 0.353553385 : f32
    %253 = vector.broadcast %cst_132 : f32 to vector<8x8xf32>
    %254 = arith.mulf %252, %253 : vector<8x8xf32>
    %cst_133 = arith.constant dense<0xFF800000> : vector<8xf32>
    %255 = vector.multi_reduction <maximumf>, %254, %cst_133 [1] : vector<8x8xf32> to vector<8xf32>
    %256 = vector.shape_cast %255 : vector<8xf32> to vector<8x1xf32>
    %257 = vector.broadcast %256 : vector<8x1xf32> to vector<8x8xf32>
    %258 = arith.subf %254, %257 : vector<8x8xf32>
    %259 = math.exp %258 : vector<8x8xf32>
    %cst_134 = arith.constant dense<0.000000e+00> : vector<8xf32>
    %260 = vector.multi_reduction <add>, %259, %cst_134 [1] : vector<8x8xf32> to vector<8xf32>
    %261 = vector.shape_cast %260 : vector<8xf32> to vector<8x1xf32>
    %262 = vector.broadcast %261 : vector<8x1xf32> to vector<8x8xf32>
    %263 = arith.divf %259, %262 : vector<8x8xf32>
    %cst_135 = arith.constant dense<0.000000e+00> : vector<8x8xf32>
    %264 = tpu.matmul %263, %251, %cst_135 {dimension_numbers = #tpu.dot_dimension_numbers<[1], [0], [0], [1], [0, 0, 1, 1], [], []>} : vector<8x8xf32>, vector<8x8xf32>, vector<8x8xf32> -> vector<8x8xf32>
    %c0_136 = arith.constant 0 : index
    %c0_137 = arith.constant 0 : index
    %265 = vector.load %arg4[%c0_136, %c0_137] : memref<16x32xf32, #tpu.memory_space<vmem>>, vector<8x8xf32>
    tpu.vector_store %arg4[%c0_136, %c0_137], %264 {strides = array<i32>} : memref<16x32xf32, #tpu.memory_space<vmem>>, vector<8x8xf32>,
    %266 = vector.extract_strided_slice %248 {offsets = [0, 8], sizes = [8, 8], strides = [1, 1]} : vector<16x96xf32> to vector<8x8xf32>
    %267 = vector.extract_strided_slice %248 {offsets = [0, 40], sizes = [8, 8], strides = [1, 1]} : vector<16x96xf32> to vector<8x8xf32>
    %268 = vector.extract_strided_slice %248 {offsets = [0, 72], sizes = [8, 8], strides = [1, 1]} : vector<16x96xf32> to vector<8x8xf32>
    %cst_138 = arith.constant dense<0.000000e+00> : vector<8x8xf32>
    %269 = tpu.matmul %266, %267, %cst_138 {dimension_numbers = #tpu.dot_dimension_numbers<[1], [1], [0], [0], [0, 0, 1, 0], [], []>} : vector<8x8xf32>, vector<8x8xf32>, vector<8x8xf32> -> vector<8x8xf32>
    %cst_139 = arith.constant 0.353553385 : f32
    %270 = vector.broadcast %cst_139 : f32 to vector<8x8xf32>
    %271 = arith.mulf %269, %270 : vector<8x8xf32>
    %cst_140 = arith.constant dense<0xFF800000> : vector<8xf32>
    %272 = vector.multi_reduction <maximumf>, %271, %cst_140 [1] : vector<8x8xf32> to vector<8xf32>
    %273 = vector.shape_cast %272 : vector<8xf32> to vector<8x1xf32>
    %274 = vector.broadcast %273 : vector<8x1xf32> to vector<8x8xf32>
    %275 = arith.subf %271, %274 : vector<8x8xf32>
    %276 = math.exp %275 : vector<8x8xf32>
    %cst_141 = arith.constant dense<0.000000e+00> : vector<8xf32>
    %277 = vector.multi_reduction <add>, %276, %cst_141 [1] : vector<8x8xf32> to vector<8xf32>
    %278 = vector.shape_cast %277 : vector<8xf32> to vector<8x1xf32>
    %279 = vector.broadcast %278 : vector<8x1xf32> to vector<8x8xf32>
    %280 = arith.divf %276, %279 : vector<8x8xf32>
    %cst_142 = arith.constant dense<0.000000e+00> : vector<8x8xf32>
    %281 = tpu.matmul %280, %268, %cst_142 {dimension_numbers = #tpu.dot_dimension_numbers<[1], [0], [0], [1], [0, 0, 1, 1], [], []>} : vector<8x8xf32>, vector<8x8xf32>, vector<8x8xf32> -> vector<8x8xf32>
    %c0_143 = arith.constant 0 : index
    %c8_144 = arith.constant 8 : index
    %282 = vector.load %arg4[%c0_143, %c8_144] : memref<16x32xf32, #tpu.memory_space<vmem>>, vector<8x8xf32>
    tpu.vector_store %arg4[%c0_143, %c8_144], %281 {strides = array<i32>} : memref<16x32xf32, #tpu.memory_space<vmem>>, vector<8x8xf32>,
    %283 = vector.extract_strided_slice %248 {offsets = [0, 16], sizes = [8, 8], strides = [1, 1]} : vector<16x96xf32> to vector<8x8xf32>
    %284 = vector.extract_strided_slice %248 {offsets = [0, 48], sizes = [8, 8], strides = [1, 1]} : vector<16x96xf32> to vector<8x8xf32>
    %285 = vector.extract_strided_slice %248 {offsets = [0, 80], sizes = [8, 8], strides = [1, 1]} : vector<16x96xf32> to vector<8x8xf32>
    %cst_145 = arith.constant dense<0.000000e+00> : vector<8x8xf32>
    %286 = tpu.matmul %283, %284, %cst_145 {dimension_numbers = #tpu.dot_dimension_numbers<[1], [1], [0], [0], [0, 0, 1, 0], [], []>} : vector<8x8xf32>, vector<8x8xf32>, vector<8x8xf32> -> vector<8x8xf32>
    %cst_146 = arith.constant 0.353553385 : f32
    %287 = vector.broadcast %cst_146 : f32 to vector<8x8xf32>
    %288 = arith.mulf %286, %287 : vector<8x8xf32>
    %cst_147 = arith.constant dense<0xFF800000> : vector<8xf32>
    %289 = vector.multi_reduction <maximumf>, %288, %cst_147 [1] : vector<8x8xf32> to vector<8xf32>
    %290 = vector.shape_cast %289 : vector<8xf32> to vector<8x1xf32>
    %291 = vector.broadcast %290 : vector<8x1xf32> to vector<8x8xf32>
    %292 = arith.subf %288, %291 : vector<8x8xf32>
    %293 = math.exp %292 : vector<8x8xf32>
    %cst_148 = arith.constant dense<0.000000e+00> : vector<8xf32>
    %294 = vector.multi_reduction <add>, %293, %cst_148 [1] : vector<8x8xf32> to vector<8xf32>
    %295 = vector.shape_cast %294 : vector<8xf32> to vector<8x1xf32>
    %296 = vector.broadcast %295 : vector<8x1xf32> to vector<8x8xf32>
    %297 = arith.divf %293, %296 : vector<8x8xf32>
    %cst_149 = arith.constant dense<0.000000e+00> : vector<8x8xf32>
    %298 = tpu.matmul %297, %285, %cst_149 {dimension_numbers = #tpu.dot_dimension_numbers<[1], [0], [0], [1], [0, 0, 1, 1], [], []>} : vector<8x8xf32>, vector<8x8xf32>, vector<8x8xf32> -> vector<8x8xf32>
    %c0_150 = arith.constant 0 : index
    %c16_151 = arith.constant 16 : index
    %299 = vector.load %arg4[%c0_150, %c16_151] : memref<16x32xf32, #tpu.memory_space<vmem>>, vector<8x8xf32>
    tpu.vector_store %arg4[%c0_150, %c16_151], %298 {strides = array<i32>} : memref<16x32xf32, #tpu.memory_space<vmem>>, vector<8x8xf32>,
    %300 = vector.extract_strided_slice %248 {offsets = [0, 24], sizes = [8, 8], strides = [1, 1]} : vector<16x96xf32> to vector<8x8xf32>
    %301 = vector.extract_strided_slice %248 {offsets = [0, 56], sizes = [8, 8], strides = [1, 1]} : vector<16x96xf32> to vector<8x8xf32>
    %302 = vector.extract_strided_slice %248 {offsets = [0, 88], sizes = [8, 8], strides = [1, 1]} : vector<16x96xf32> to vector<8x8xf32>
    %cst_152 = arith.constant dense<0.000000e+00> : vector<8x8xf32>
    %303 = tpu.matmul %300, %301, %cst_152 {dimension_numbers = #tpu.dot_dimension_numbers<[1], [1], [0], [0], [0, 0, 1, 0], [], []>} : vector<8x8xf32>, vector<8x8xf32>, vector<8x8xf32> -> vector<8x8xf32>
    %cst_153 = arith.constant 0.353553385 : f32
    %304 = vector.broadcast %cst_153 : f32 to vector<8x8xf32>
    %305 = arith.mulf %303, %304 : vector<8x8xf32>
    %cst_154 = arith.constant dense<0xFF800000> : vector<8xf32>
    %306 = vector.multi_reduction <maximumf>, %305, %cst_154 [1] : vector<8x8xf32> to vector<8xf32>
    %307 = vector.shape_cast %306 : vector<8xf32> to vector<8x1xf32>
    %308 = vector.broadcast %307 : vector<8x1xf32> to vector<8x8xf32>
    %309 = arith.subf %305, %308 : vector<8x8xf32>
    %310 = math.exp %309 : vector<8x8xf32>
    %cst_155 = arith.constant dense<0.000000e+00> : vector<8xf32>
    %311 = vector.multi_reduction <add>, %310, %cst_155 [1] : vector<8x8xf32> to vector<8xf32>
    %312 = vector.shape_cast %311 : vector<8xf32> to vector<8x1xf32>
    %313 = vector.broadcast %312 : vector<8x1xf32> to vector<8x8xf32>
    %314 = arith.divf %310, %313 : vector<8x8xf32>
    %cst_156 = arith.constant dense<0.000000e+00> : vector<8x8xf32>
    %315 = tpu.matmul %314, %302, %cst_156 {dimension_numbers = #tpu.dot_dimension_numbers<[1], [0], [0], [1], [0, 0, 1, 1], [], []>} : vector<8x8xf32>, vector<8x8xf32>, vector<8x8xf32> -> vector<8x8xf32>
    %c0_157 = arith.constant 0 : index
    %c24_158 = arith.constant 24 : index
    %316 = vector.load %arg4[%c0_157, %c24_158] : memref<16x32xf32, #tpu.memory_space<vmem>>, vector<8x8xf32>
    tpu.vector_store %arg4[%c0_157, %c24_158], %315 {strides = array<i32>} : memref<16x32xf32, #tpu.memory_space<vmem>>, vector<8x8xf32>,
    %317 = vector.extract_strided_slice %248 {offsets = [8, 0], sizes = [8, 8], strides = [1, 1]} : vector<16x96xf32> to vector<8x8xf32>
    %318 = vector.extract_strided_slice %248 {offsets = [8, 32], sizes = [8, 8], strides = [1, 1]} : vector<16x96xf32> to vector<8x8xf32>
    %319 = vector.extract_strided_slice %248 {offsets = [8, 64], sizes = [8, 8], strides = [1, 1]} : vector<16x96xf32> to vector<8x8xf32>
    %cst_159 = arith.constant dense<0.000000e+00> : vector<8x8xf32>
    %320 = tpu.matmul %317, %318, %cst_159 {dimension_numbers = #tpu.dot_dimension_numbers<[1], [1], [0], [0], [0, 0, 1, 0], [], []>} : vector<8x8xf32>, vector<8x8xf32>, vector<8x8xf32> -> vector<8x8xf32>
    %cst_160 = arith.constant 0.353553385 : f32
    %321 = vector.broadcast %cst_160 : f32 to vector<8x8xf32>
    %322 = arith.mulf %320, %321 : vector<8x8xf32>
    %cst_161 = arith.constant dense<0xFF800000> : vector<8xf32>
    %323 = vector.multi_reduction <maximumf>, %322, %cst_161 [1] : vector<8x8xf32> to vector<8xf32>
    %324 = vector.shape_cast %323 : vector<8xf32> to vector<8x1xf32>
    %325 = vector.broadcast %324 : vector<8x1xf32> to vector<8x8xf32>
    %326 = arith.subf %322, %325 : vector<8x8xf32>
    %327 = math.exp %326 : vector<8x8xf32>
    %cst_162 = arith.constant dense<0.000000e+00> : vector<8xf32>
    %328 = vector.multi_reduction <add>, %327, %cst_162 [1] : vector<8x8xf32> to vector<8xf32>
    %329 = vector.shape_cast %328 : vector<8xf32> to vector<8x1xf32>
    %330 = vector.broadcast %329 : vector<8x1xf32> to vector<8x8xf32>
    %331 = arith.divf %327, %330 : vector<8x8xf32>
    %cst_163 = arith.constant dense<0.000000e+00> : vector<8x8xf32>
    %332 = tpu.matmul %331, %319, %cst_163 {dimension_numbers = #tpu.dot_dimension_numbers<[1], [0], [0], [1], [0, 0, 1, 1], [], []>} : vector<8x8xf32>, vector<8x8xf32>, vector<8x8xf32> -> vector<8x8xf32>
    %c8_164 = arith.constant 8 : index
    %c0_165 = arith.constant 0 : index
    %333 = vector.load %arg4[%c8_164, %c0_165] : memref<16x32xf32, #tpu.memory_space<vmem>>, vector<8x8xf32>
    tpu.vector_store %arg4[%c8_164, %c0_165], %332 {strides = array<i32>} : memref<16x32xf32, #tpu.memory_space<vmem>>, vector<8x8xf32>,
    %334 = vector.extract_strided_slice %248 {offsets = [8, 8], sizes = [8, 8], strides = [1, 1]} : vector<16x96xf32> to vector<8x8xf32>
    %335 = vector.extract_strided_slice %248 {offsets = [8, 40], sizes = [8, 8], strides = [1, 1]} : vector<16x96xf32> to vector<8x8xf32>
    %336 = vector.extract_strided_slice %248 {offsets = [8, 72], sizes = [8, 8], strides = [1, 1]} : vector<16x96xf32> to vector<8x8xf32>
    %cst_166 = arith.constant dense<0.000000e+00> : vector<8x8xf32>
    %337 = tpu.matmul %334, %335, %cst_166 {dimension_numbers = #tpu.dot_dimension_numbers<[1], [1], [0], [0], [0, 0, 1, 0], [], []>} : vector<8x8xf32>, vector<8x8xf32>, vector<8x8xf32> -> vector<8x8xf32>
    %cst_167 = arith.constant 0.353553385 : f32
    %338 = vector.broadcast %cst_167 : f32 to vector<8x8xf32>
    %339 = arith.mulf %337, %338 : vector<8x8xf32>
    %cst_168 = arith.constant dense<0xFF800000> : vector<8xf32>
    %340 = vector.multi_reduction <maximumf>, %339, %cst_168 [1] : vector<8x8xf32> to vector<8xf32>
    %341 = vector.shape_cast %340 : vector<8xf32> to vector<8x1xf32>
    %342 = vector.broadcast %341 : vector<8x1xf32> to vector<8x8xf32>
    %343 = arith.subf %339, %342 : vector<8x8xf32>
    %344 = math.exp %343 : vector<8x8xf32>
    %cst_169 = arith.constant dense<0.000000e+00> : vector<8xf32>
    %345 = vector.multi_reduction <add>, %344, %cst_169 [1] : vector<8x8xf32> to vector<8xf32>
    %346 = vector.shape_cast %345 : vector<8xf32> to vector<8x1xf32>
    %347 = vector.broadcast %346 : vector<8x1xf32> to vector<8x8xf32>
    %348 = arith.divf %344, %347 : vector<8x8xf32>
    %cst_170 = arith.constant dense<0.000000e+00> : vector<8x8xf32>
    %349 = tpu.matmul %348, %336, %cst_170 {dimension_numbers = #tpu.dot_dimension_numbers<[1], [0], [0], [1], [0, 0, 1, 1], [], []>} : vector<8x8xf32>, vector<8x8xf32>, vector<8x8xf32> -> vector<8x8xf32>
    %c8_171 = arith.constant 8 : index
    %c8_172 = arith.constant 8 : index
    %350 = vector.load %arg4[%c8_171, %c8_172] : memref<16x32xf32, #tpu.memory_space<vmem>>, vector<8x8xf32>
    tpu.vector_store %arg4[%c8_171, %c8_172], %349 {strides = array<i32>} : memref<16x32xf32, #tpu.memory_space<vmem>>, vector<8x8xf32>,
    %351 = vector.extract_strided_slice %248 {offsets = [8, 16], sizes = [8, 8], strides = [1, 1]} : vector<16x96xf32> to vector<8x8xf32>
    %352 = vector.extract_strided_slice %248 {offsets = [8, 48], sizes = [8, 8], strides = [1, 1]} : vector<16x96xf32> to vector<8x8xf32>
    %353 = vector.extract_strided_slice %248 {offsets = [8, 80], sizes = [8, 8], strides = [1, 1]} : vector<16x96xf32> to vector<8x8xf32>
    %cst_173 = arith.constant dense<0.000000e+00> : vector<8x8xf32>
    %354 = tpu.matmul %351, %352, %cst_173 {dimension_numbers = #tpu.dot_dimension_numbers<[1], [1], [0], [0], [0, 0, 1, 0], [], []>} : vector<8x8xf32>, vector<8x8xf32>, vector<8x8xf32> -> vector<8x8xf32>
    %cst_174 = arith.constant 0.353553385 : f32
    %355 = vector.broadcast %cst_174 : f32 to vector<8x8xf32>
    %356 = arith.mulf %354, %355 : vector<8x8xf32>
    %cst_175 = arith.constant dense<0xFF800000> : vector<8xf32>
    %357 = vector.multi_reduction <maximumf>, %356, %cst_175 [1] : vector<8x8xf32> to vector<8xf32>
    %358 = vector.shape_cast %357 : vector<8xf32> to vector<8x1xf32>
    %359 = vector.broadcast %358 : vector<8x1xf32> to vector<8x8xf32>
    %360 = arith.subf %356, %359 : vector<8x8xf32>
    %361 = math.exp %360 : vector<8x8xf32>
    %cst_176 = arith.constant dense<0.000000e+00> : vector<8xf32>
    %362 = vector.multi_reduction <add>, %361, %cst_176 [1] : vector<8x8xf32> to vector<8xf32>
    %363 = vector.shape_cast %362 : vector<8xf32> to vector<8x1xf32>
    %364 = vector.broadcast %363 : vector<8x1xf32> to vector<8x8xf32>
    %365 = arith.divf %361, %364 : vector<8x8xf32>
    %cst_177 = arith.constant dense<0.000000e+00> : vector<8x8xf32>
    %366 = tpu.matmul %365, %353, %cst_177 {dimension_numbers = #tpu.dot_dimension_numbers<[1], [0], [0], [1], [0, 0, 1, 1], [], []>} : vector<8x8xf32>, vector<8x8xf32>, vector<8x8xf32> -> vector<8x8xf32>
    %c8_178 = arith.constant 8 : index
    %c16_179 = arith.constant 16 : index
    %367 = vector.load %arg4[%c8_178, %c16_179] : memref<16x32xf32, #tpu.memory_space<vmem>>, vector<8x8xf32>
    tpu.vector_store %arg4[%c8_178, %c16_179], %366 {strides = array<i32>} : memref<16x32xf32, #tpu.memory_space<vmem>>, vector<8x8xf32>,
    %368 = vector.extract_strided_slice %248 {offsets = [8, 24], sizes = [8, 8], strides = [1, 1]} : vector<16x96xf32> to vector<8x8xf32>
    %369 = vector.extract_strided_slice %248 {offsets = [8, 56], sizes = [8, 8], strides = [1, 1]} : vector<16x96xf32> to vector<8x8xf32>
    %370 = vector.extract_strided_slice %248 {offsets = [8, 88], sizes = [8, 8], strides = [1, 1]} : vector<16x96xf32> to vector<8x8xf32>
    %cst_180 = arith.constant dense<0.000000e+00> : vector<8x8xf32>
    %371 = tpu.matmul %368, %369, %cst_180 {dimension_numbers = #tpu.dot_dimension_numbers<[1], [1], [0], [0], [0, 0, 1, 0], [], []>} : vector<8x8xf32>, vector<8x8xf32>, vector<8x8xf32> -> vector<8x8xf32>
    %cst_181 = arith.constant 0.353553385 : f32
    %372 = vector.broadcast %cst_181 : f32 to vector<8x8xf32>
    %373 = arith.mulf %371, %372 : vector<8x8xf32>
    %cst_182 = arith.constant dense<0xFF800000> : vector<8xf32>
    %374 = vector.multi_reduction <maximumf>, %373, %cst_182 [1] : vector<8x8xf32> to vector<8xf32>
    %375 = vector.shape_cast %374 : vector<8xf32> to vector<8x1xf32>
    %376 = vector.broadcast %375 : vector<8x1xf32> to vector<8x8xf32>
    %377 = arith.subf %373, %376 : vector<8x8xf32>
    %378 = math.exp %377 : vector<8x8xf32>
    %cst_183 = arith.constant dense<0.000000e+00> : vector<8xf32>
    %379 = vector.multi_reduction <add>, %378, %cst_183 [1] : vector<8x8xf32> to vector<8xf32>
    %380 = vector.shape_cast %379 : vector<8xf32> to vector<8x1xf32>
    %381 = vector.broadcast %380 : vector<8x1xf32> to vector<8x8xf32>
    %382 = arith.divf %378, %381 : vector<8x8xf32>
    %cst_184 = arith.constant dense<0.000000e+00> : vector<8x8xf32>
    %383 = tpu.matmul %382, %370, %cst_184 {dimension_numbers = #tpu.dot_dimension_numbers<[1], [0], [0], [1], [0, 0, 1, 1], [], []>} : vector<8x8xf32>, vector<8x8xf32>, vector<8x8xf32> -> vector<8x8xf32>
    %c8_185 = arith.constant 8 : index
    %c24_186 = arith.constant 24 : index
    %384 = vector.load %arg4[%c8_185, %c24_186] : memref<16x32xf32, #tpu.memory_space<vmem>>, vector<8x8xf32>
    tpu.vector_store %arg4[%c8_185, %c24_186], %383 {strides = array<i32>} : memref<16x32xf32, #tpu.memory_space<vmem>>, vector<8x8xf32>,
    %c0_187 = arith.constant 0 : index
    %c0_188 = arith.constant 0 : index
    %385 = vector.load %arg4[%c0_187, %c0_188] : memref<16x32xf32, #tpu.memory_space<vmem>>, vector<16x32xf32>
    %cst_189 = arith.constant dense<0.000000e+00> : vector<16x32xf32>
    %386 = tpu.matmul %385, %225, %cst_189 {dimension_numbers = #tpu.dot_dimension_numbers<[1], [0], [0], [1], [0, 0, 1, 1], [], []>} : vector<16x32xf32>, vector<32x32xf32>, vector<16x32xf32> -> vector<16x32xf32>
    %387 = vector.broadcast %233 : vector<1x32xf32> to vector<16x32xf32>
    %388 = arith.addf %386, %387 : vector<16x32xf32>
    %389 = arith.addf %221, %388 : vector<16x32xf32>
    %cst_190 = arith.constant dense<0.000000e+00> : vector<16xf32>
    %390 = vector.multi_reduction <add>, %389, %cst_190 [1] : vector<16x32xf32> to vector<16xf32>
    %391 = vector.shape_cast %390 : vector<16xf32> to vector<16x1xf32>
    %cst_191 = arith.constant 3.200000e+01 : f32
    %392 = vector.broadcast %cst_191 : f32 to vector<16x1xf32>
    %393 = arith.divf %391, %392 : vector<16x1xf32>
    %394 = vector.broadcast %393 : vector<16x1xf32> to vector<16x32xf32>
    %395 = arith.subf %389, %394 : vector<16x32xf32>
    %396 = arith.mulf %395, %395 : vector<16x32xf32>
    %cst_192 = arith.constant dense<0.000000e+00> : vector<16xf32>
    %397 = vector.multi_reduction <add>, %396, %cst_192 [1] : vector<16x32xf32> to vector<16xf32>
    %398 = vector.shape_cast %397 : vector<16xf32> to vector<16x1xf32>
    %cst_193 = arith.constant 3.200000e+01 : f32
    %399 = vector.broadcast %cst_193 : f32 to vector<16x1xf32>
    %400 = arith.divf %398, %399 : vector<16x1xf32>
    %401 = vector.broadcast %393 : vector<16x1xf32> to vector<16x32xf32>
    %402 = arith.subf %389, %401 : vector<16x32xf32>
    %cst_194 = arith.constant 9.99999974E-6 : f32
    %403 = vector.broadcast %cst_194 : f32 to vector<16x1xf32>
    %404 = arith.addf %400, %403 : vector<16x1xf32>
    %405 = math.rsqrt %404 : vector<16x1xf32>
    %406 = vector.broadcast %405 : vector<16x1xf32> to vector<16x32xf32>
    %407 = arith.mulf %402, %406 : vector<16x32xf32>
    %408 = vector.broadcast %239 : vector<1x32xf32> to vector<16x32xf32>
    %409 = arith.mulf %407, %408 : vector<16x32xf32>
    %410 = vector.broadcast %241 : vector<1x32xf32> to vector<16x32xf32>
    %411 = arith.addf %409, %410 : vector<16x32xf32>
    %cst_195 = arith.constant dense<0.000000e+00> : vector<16x64xf32>
    %412 = tpu.matmul %411, %227, %cst_195 {dimension_numbers = #tpu.dot_dimension_numbers<[1], [0], [0], [1], [0, 0, 1, 1], [], []>} : vector<16x32xf32>, vector<32x64xf32>, vector<16x64xf32> -> vector<16x64xf32>
    %413 = vector.broadcast %235 : vector<1x64xf32> to vector<16x64xf32>
    %414 = arith.addf %412, %413 : vector<16x64xf32>
    %cst_196 = arith.constant 0.000000e+00 : f32
    %415 = vector.broadcast %cst_196 : f32 to vector<16x64xf32>
    %416 = arith.maximumf %414, %415 : vector<16x64xf32>
    %cst_197 = arith.constant dense<0.000000e+00> : vector<16x32xf32>
    %417 = tpu.matmul %416, %229, %cst_197 {dimension_numbers = #tpu.dot_dimension_numbers<[1], [0], [0], [1], [0, 0, 1, 1], [], []>} : vector<16x64xf32>, vector<64x32xf32>, vector<16x32xf32> -> vector<16x32xf32>
    %418 = vector.broadcast %237 : vector<1x32xf32> to vector<16x32xf32>
    %419 = arith.addf %417, %418 : vector<16x32xf32>
    %420 = arith.addf %411, %419 : vector<16x32xf32>
    %cst_198 = arith.constant dense<0.000000e+00> : vector<16xf32>
    %421 = vector.multi_reduction <add>, %420, %cst_198 [1] : vector<16x32xf32> to vector<16xf32>
    %422 = vector.shape_cast %421 : vector<16xf32> to vector<16x1xf32>
    %cst_199 = arith.constant 3.200000e+01 : f32
    %423 = vector.broadcast %cst_199 : f32 to vector<16x1xf32>
    %424 = arith.divf %422, %423 : vector<16x1xf32>
    %425 = vector.broadcast %424 : vector<16x1xf32> to vector<16x32xf32>
    %426 = arith.subf %420, %425 : vector<16x32xf32>
    %427 = arith.mulf %426, %426 : vector<16x32xf32>
    %cst_200 = arith.constant dense<0.000000e+00> : vector<16xf32>
    %428 = vector.multi_reduction <add>, %427, %cst_200 [1] : vector<16x32xf32> to vector<16xf32>
    %429 = vector.shape_cast %428 : vector<16xf32> to vector<16x1xf32>
    %cst_201 = arith.constant 3.200000e+01 : f32
    %430 = vector.broadcast %cst_201 : f32 to vector<16x1xf32>
    %431 = arith.divf %429, %430 : vector<16x1xf32>
    %432 = vector.broadcast %424 : vector<16x1xf32> to vector<16x32xf32>
    %433 = arith.subf %420, %432 : vector<16x32xf32>
    %cst_202 = arith.constant 9.99999974E-6 : f32
    %434 = vector.broadcast %cst_202 : f32 to vector<16x1xf32>
    %435 = arith.addf %431, %434 : vector<16x1xf32>
    %436 = math.rsqrt %435 : vector<16x1xf32>
    %437 = vector.broadcast %436 : vector<16x1xf32> to vector<16x32xf32>
    %438 = arith.mulf %433, %437 : vector<16x32xf32>
    %439 = vector.broadcast %243 : vector<1x32xf32> to vector<16x32xf32>
    %440 = arith.mulf %438, %439 : vector<16x32xf32>
    %441 = vector.broadcast %245 : vector<1x32xf32> to vector<16x32xf32>
    %442 = arith.addf %440, %441 : vector<16x32xf32>
    %c0_203 = arith.constant 0 : index
    %c0_204 = arith.constant 0 : index
    %443 = vector.load %arg3[%c0_203, %c0_204] : memref<16x32xf32, #tpu.memory_space<vmem>>, vector<16x32xf32>
    tpu.vector_store %arg3[%c0_203, %c0_204], %442 {strides = array<i32>} : memref<16x32xf32, #tpu.memory_space<vmem>>, vector<16x32xf32>,
    return
  }
  func.func @transform_0(%arg0: i32) -> (i32, i32) {
    %c0_i32 = arith.constant 0 : i32
    %c0_i32_0 = arith.constant 0 : i32
    %c0_i32_1 = arith.constant 0 : i32
    return %c0_i32, %c0_i32_0 : i32, i32
  }
  func.func @transform_1(%arg0: i32) -> (i32, i32, i32) {
    %c0_i32 = arith.constant 0 : i32
    %c0_i32_0 = arith.constant 0 : i32
    %c0_i32_1 = arith.constant 0 : i32
    %c0_i32_2 = arith.constant 0 : i32
    return %c0_i32, %c0_i32_0, %c0_i32_1 : i32, i32, i32
  }
  func.func @transform_2(%arg0: i32) -> (i32, i32) {
    %c0_i32 = arith.constant 0 : i32
    %c0_i32_0 = arith.constant 0 : i32
    %c0_i32_1 = arith.constant 0 : i32
    return %c0_i32, %c0_i32_0 : i32, i32
  }
}

</mosaic_0001>

<llo_original>
// kernel: transformer_encoder.1
$region0: #{transformer_encoder.1}
  #allocation0 [shape = 'u32[]', space=smem, size = 0x4, offset = 0x4, fixed_abs, tag = 'smem constant byte address 0x4 - core index']
  #allocation1 [shape = 'u32[72,128]{1,0:T(1,128)}', space=vmem, size = 0x9000, scoped, tag = 'internal scratch']
  #allocation2 [shape = 'f32[16,32]{1,0:T(8,128)}', space=vmem, size = 0x2000, scoped, tag = 'scratch operand']
  %s0 = inlined_call_operand.hbm [shape: f32[16,32], index: 0, kind: input, shape index: {}]
  %s1 = inlined_call_operand.hbm [shape: f32[2,168,128], index: 1, kind: input, shape index: {}]
  %s2 = inlined_call_operand.hbm [shape: f32[16,32], index: 2, kind: output, shape index: {}]
  %s3 = sld [smem:[#allocation0]]
  $region26: #{transformer_encoder.1} parent=0
    _
  %s5 = ssub.s32 1, %s3
  %s6 = scalar_select 0, %s5, %s3
  $region1: #{transformer_encoder.1} parent=0
    #allocation3 [shape = 'u8[8192]{0}', space=vmem, size = 0x2000, scoped, tag = 'input window, operand 0, single buffered']
    #allocation4 [shape = 's32[1]{0}', space=sflag, size = 0x4, scoped, tag = 'scoped memory for transformer_encoder.1']
    #allocation5 [shape = 's32[1]{0}', space=sflag, size = 0x4, scoped, tag = 'scoped memory for transformer_encoder.1']
    #allocation6 [shape = 'u8[172032]{0}', space=vmem, size = 0x2a000, scoped, tag = 'input window, operand 1, single buffered']
    #allocation7 [shape = 's32[1]{0}', space=sflag, size = 0x4, scoped, tag = 'scoped memory for transformer_encoder.1']
    #allocation8 [shape = 'u8[8192]{0}', space=vmem, size = 0x2000, scoped, tag = 'output window, operand 0, single buffered']
    %7 = vsyncpa [#allocation4], 0
    %8 = vsyncpa [#allocation7], 0
    %9 = vsyncpa [#allocation5], 0
    // Predicated region
    $region2: #{transformer_encoder.1} parent=1 // pred_check
      _
    $region3: #{transformer_encoder.1} parent=1 // pred_check_branch
      %11 = sbr.rel (0) target = $region5
    $region4: #{transformer_encoder.1} parent=1 // pred_region
      %13 = vsyncadd [#allocation4], 0
      %s14 = sshll.u32 %s0, 4
      %s15 = int_to_ptr.hbm [resolvable:$true] %s14
      %s16 = sshll.u32 [#allocation3], 4
      %s17 = int_to_ptr.vmem [resolvable:$true] %s16
      %22 = dma.hbm_to_vmem [thread:$0]  %s15, 256, %s17, [#allocation4], 128, 128, 8
    $region5: #{transformer_encoder.1} parent=1 // pred_fallthru
      _
    // Predicated region
    $region6: #{transformer_encoder.1} parent=1 // pred_check
      _
    $region7: #{transformer_encoder.1} parent=1 // pred_check_branch
      %24 = sbr.rel (0) target = $region9
    $region8: #{transformer_encoder.1} parent=1 // pred_region
      %26 = vsyncadd [#allocation7], 0
      %s27 = sshll.u32 %s1, 4
      %s28 = int_to_ptr.hbm [resolvable:$true] %s27
      %s29 = sshll.u32 [#allocation6], 4
      %s30 = int_to_ptr.vmem [resolvable:$true] %s29
      %35 = dma.hbm_to_vmem [thread:$0]  %s28, 5376, %s30, [#allocation7], 128, 128, 8
    $region9: #{transformer_encoder.1} parent=1 // pred_fallthru
      _
    // Predicated region
    $region10: #{transformer_encoder.1} parent=1 // pred_check
      _
    $region11: #{transformer_encoder.1} parent=1 // pred_check_branch
      %37 = sbr.rel (0) target = $region13
    $region12: #{transformer_encoder.1} parent=1 // pred_region
      %39 = dma.done [#allocation4], 256
    $region13: #{transformer_encoder.1} parent=1 // pred_fallthru
      _
    // Predicated region
    $region14: #{transformer_encoder.1} parent=1 // pred_check
      _
    $region15: #{transformer_encoder.1} parent=1 // pred_check_branch
      %41 = sbr.rel (0) target = $region17
    $region16: #{transformer_encoder.1} parent=1 // pred_region
      %43 = dma.done [#allocation7], 5376
    $region17: #{transformer_encoder.1} parent=1 // pred_fallthru
      _
    %v44 = vld [vmem:[#allocation3] sm:$0xff]
    %v45 = vld [vmem:[#allocation3 + $0x8] sm:$0xff]
    %v46 = vld [vmem:[#allocation6] sm:$0xff]
    %v47 = vld [vmem:[#allocation6 + $0x8] sm:$0xff]
    %v48 = vld [vmem:[#allocation6 + $0x10] sm:$0xff]
    %v49 = vld [vmem:[#allocation6 + $0x18] sm:$0xff]
    %v50 = vld [vmem:[#allocation6 + $0x20] sm:$0xff]
    %v51 = vld [vmem:[#allocation6 + $0x28] sm:$0xff]
    %v52 = vld [vmem:[#allocation6 + $0x30] sm:$0xff]
    %v53 = vld [vmem:[#allocation6 + $0x38] sm:$0xff]
    %v54 = vld [vmem:[#allocation6 + $0x40] sm:$0xff]
    %v55 = vld [vmem:[#allocation6 + $0x48] sm:$0xff]
    %v56 = vld [vmem:[#allocation6 + $0x50] sm:$0xff]
    %v57 = vld [vmem:[#allocation6 + $0x58] sm:$0xff]
    %v58 = vld [vmem:[#allocation6 + $0x60] sm:$0xff]
    %v59 = vld [vmem:[#allocation6 + $0x68] sm:$0xff]
    %v60 = vld [vmem:[#allocation6 + $0x70] sm:$0xff]
    %v61 = vld [vmem:[#allocation6 + $0x78] sm:$0xff]
    %v62 = vld [vmem:[#allocation6 + $0x80] sm:$0xff]
    %v63 = vld [vmem:[#allocation6 + $0x88] sm:$0xff]
    %v64 = vld [vmem:[#allocation6 + $0x90] sm:$0xff]
    %v65 = vld [vmem:[#allocation6 + $0x98] sm:$0xff]
    %v66 = vld [vmem:[#allocation6 + $0xa0] sm:$0x1]
    %v67 = vld [vmem:[#allocation6 + $0xa1] sm:$0x1]
    %v68 = vld [vmem:[#allocation6 + $0xa2] sm:$0x1]
    %v69 = vld [vmem:[#allocation6 + $0xa3] sm:$0x1]
    %v70 = vld [vmem:[#allocation6 + $0xa4] sm:$0x1]
    %v71 = vld [vmem:[#allocation6 + $0xa5] sm:$0x1]
    %v72 = vld [vmem:[#allocation6 + $0xa6] sm:$0x1]
    %v73 = vld [vmem:[#allocation6 + $0xa7] sm:$0x1]
    %v74 = vperm.slane %v66, 0
    %vm75 = vcmask 261120
    %v77 = vsel %vm75, %v44, 0
    %v80 = vsel %vm75, %v45, 0
    %82 = vmatpush.msra.mxu0 0.0
    %83 = vmatpush.msra.mxu0 0.0
    %84 = vmatpush.msra.mxu0 0.0
    %85 = vmatpush.msra.mxu0 0.0
    %86 = vmatpush.msra.mxu0 0.0
    %87 = vmatpush.msra.mxu0 0.0
    %88 = vmatpush.msra.mxu0 0.0
    %89 = vmatpush.msra.mxu0 0.0
    %90 = vmatpush.msra.mxu0 0.0
    %91 = vmatpush.msra.mxu0 0.0
    %92 = vmatpush.msra.mxu0 0.0
    %93 = vmatpush.msra.mxu0 0.0
    %94 = vmatpush.msra.mxu0 %v49
    %95 = vmatpush.msra.mxu0 %v48
    %96 = vmatpush.msra.mxu0 %v47
    %97 = vmatpush.msra.mxu0 %v46
    %98 = vmatmul.f32.gmra.mxu0 %v77
    %v99 = vpop.f32.mrf.mxu0
    %v100 = vadd.f32 %v74, %v99
    %101 = vmatmul.f32.gmra.mxu0 %v80
    %v102 = vpop.f32.mrf.mxu0
    %v103 = vadd.f32 %v74, %v102
    %104 = vdwg.mxu0
    %106 = vrot.lane.b32.xlu0 %v100, 96
    %v107 = vpop.permute.xlu0 %106
    %vm108 = vcmask 64512
    %v109 = vsel %vm108, %v100, 0
    %v111 = vsel %vm108, %v107, 0
    %113 = vmatpush.xpose.msra.mxu0 0.0
    %114 = vmatpush.xpose.msra.mxu0 0.0
    %115 = vmatpush.xpose.msra.mxu0 0.0
    %116 = vmatpush.xpose.msra.mxu0 0.0
    %117 = vmatpush.xpose.msra.mxu0 0.0
    %118 = vmatpush.xpose.msra.mxu0 0.0
    %119 = vmatpush.xpose.msra.mxu0 0.0
    %120 = vmatpush.xpose.msra.mxu0 0.0
    %121 = vmatpush.xpose.msra.mxu0 0.0
    %122 = vmatpush.xpose.msra.mxu0 0.0
    %123 = vmatpush.xpose.msra.mxu0 0.0
    %124 = vmatpush.xpose.msra.mxu0 0.0
    %125 = vmatpush.xpose.msra.mxu0 0.0
    %126 = vmatpush.xpose.msra.mxu0 0.0
    %127 = vmatpush.xpose.msra.mxu0 0.0
    %128 = vmatpush.xpose.msra.mxu0 %v111
    %129 = vmatmul.f32.gmra.mxu0 %v109
    %v130 = vpop.f32.mrf.mxu0
    %v131 = vadd.f32 0.0, %v130
    %132 = vdwg.mxu0
    %v133 = vmul.f32 %v131, 0.35355338
    %v134 = vsel %vm108, %v133, -inf
    %135 = vmax.xlane.f32.xlu0 %v134
    %v136 = vpop.xlane.xlu0 %135
    %v137 = vsub.f32 %v133, %v136
    %v138 = vmul.f32 %v137, 1.442695
    %v139 = vpow.pop %v138
    %v140 = vsel %vm108, %v139, 0.0
    %141 = vadd.xlane.f32.xlu0 %v140
    %v142 = vpop.xlane.xlu0 %141
    %v143 = vrcp.pop %v142
    %v144 = vmul.f32 %v142, %v143
    %v145 = vsub.f32 1.0, %v144
    %v146 = vmul.f32 %v143, %v145
    %v147 = vadd.f32 %v143, %v146
    %vm148 = vweird.f32 %v142
    %vm149 = vweird.f32 %v143
    %vm150 = vmor %vm148, %vm149
    %v151 = vsel %vm150, %v143, %v147
    %v152 = vand.u32 2147483647, %v142
    %vm153 = vcmp.eq.f32.partialorder %v152, 8.507059e+37
    %v154 = vand.u32 %v142, 2147483648
    %v155 = vor.u32 1.1754944e-38, %v154
    %v156 = vsel %vm153, %v155, %v151
    %v157 = vmul.f32 %v139, %v156
    %158 = vrot.lane.b32.xlu0 %v100, 64
    %v159 = vpop.permute.xlu0 %158
    %v162 = vsel %vm108, %v157, 0
    %164 = vmatpush.msra.mxu0 0.0
    %165 = vmatpush.msra.mxu0 0.0
    %166 = vmatpush.msra.mxu0 0.0
    %167 = vmatpush.msra.mxu0 0.0
    %168 = vmatpush.msra.mxu0 0.0
    %169 = vmatpush.msra.mxu0 0.0
    %170 = vmatpush.msra.mxu0 0.0
    %171 = vmatpush.msra.mxu0 0.0
    %172 = vmatpush.msra.mxu0 0.0
    %173 = vmatpush.msra.mxu0 0.0
    %174 = vmatpush.msra.mxu0 0.0
    %175 = vmatpush.msra.mxu0 0.0
    %176 = vmatpush.msra.mxu0 0.0
    %177 = vmatpush.msra.mxu0 0.0
    %178 = vmatpush.msra.mxu0 0.0
    %179 = vmatpush.msra.mxu0 %v159
    %180 = vmatmul.f32.gmra.mxu0 %v162
    %v181 = vpop.f32.mrf.mxu0
    %v182 = vadd.f32 0.0, %v181
    %183 = vdwg.mxu0
    %184 = vst.msk [vmem:[#allocation2] sm:$0xff] %vm108, %v182
    %185 = vrot.lane.b32.xlu0 %v100, 120
    %v186 = vpop.permute.xlu0 %185
    %187 = vrot.lane.b32.xlu0 %v100, 88
    %v188 = vpop.permute.xlu0 %187
    %v189 = vsel %vm108, %v186, 0
    %v191 = vsel %vm108, %v188, 0
    %193 = vmatpush.xpose.msra.mxu0 0.0
    %194 = vmatpush.xpose.msra.mxu0 0.0
    %195 = vmatpush.xpose.msra.mxu0 0.0
    %196 = vmatpush.xpose.msra.mxu0 0.0
    %197 = vmatpush.xpose.msra.mxu0 0.0
    %198 = vmatpush.xpose.msra.mxu0 0.0
    %199 = vmatpush.xpose.msra.mxu0 0.0
    %200 = vmatpush.xpose.msra.mxu0 0.0
    %201 = vmatpush.xpose.msra.mxu0 0.0
    %202 = vmatpush.xpose.msra.mxu0 0.0
    %203 = vmatpush.xpose.msra.mxu0 0.0
    %204 = vmatpush.xpose.msra.mxu0 0.0
    %205 = vmatpush.xpose.msra.mxu0 0.0
    %206 = vmatpush.xpose.msra.mxu0 0.0
    %207 = vmatpush.xpose.msra.mxu0 0.0
    %208 = vmatpush.xpose.msra.mxu0 %v191
    %209 = vmatmul.f32.gmra.mxu0 %v189
    %v210 = vpop.f32.mrf.mxu0
    %v211 = vadd.f32 0.0, %v210
    %212 = vdwg.mxu0
    %v213 = vmul.f32 %v211, 0.35355338
    %v214 = vsel %vm108, %v213, -inf
    %215 = vmax.xlane.f32.xlu0 %v214
    %v216 = vpop.xlane.xlu0 %215
    %v217 = vsub.f32 %v213, %v216
    %v218 = vmul.f32 %v217, 1.442695
    %v219 = vpow.pop %v218
    %v220 = vsel %vm108, %v219, 0.0
    %221 = vadd.xlane.f32.xlu0 %v220
    %v222 = vpop.xlane.xlu0 %221
    %v223 = vrcp.pop %v222
    %v224 = vmul.f32 %v222, %v223
    %v225 = vsub.f32 1.0, %v224
    %v226 = vmul.f32 %v223, %v225
    %v227 = vadd.f32 %v223, %v226
    %vm228 = vweird.f32 %v222
    %vm229 = vweird.f32 %v223
    %vm230 = vmor %vm228, %vm229
    %v231 = vsel %vm230, %v223, %v227
    %v232 = vand.u32 2147483647, %v222
    %vm233 = vcmp.eq.f32.partialorder %v232, 8.507059e+37
    %v234 = vand.u32 %v222, 2147483648
    %v235 = vor.u32 1.1754944e-38, %v234
    %v236 = vsel %vm233, %v235, %v231
    %v237 = vmul.f32 %v219, %v236
    %238 = vrot.lane.b32.xlu0 %v100, 56
    %v239 = vpop.permute.xlu0 %238
    %v242 = vsel %vm108, %v237, 0
    %244 = vmatpush.msra.mxu0 0.0
    %245 = vmatpush.msra.mxu0 0.0
    %246 = vmatpush.msra.mxu0 0.0
    %247 = vmatpush.msra.mxu0 0.0
    %248 = vmatpush.msra.mxu0 0.0
    %249 = vmatpush.msra.mxu0 0.0
    %250 = vmatpush.msra.mxu0 0.0
    %251 = vmatpush.msra.mxu0 0.0
    %252 = vmatpush.msra.mxu0 0.0
    %253 = vmatpush.msra.mxu0 0.0
    %254 = vmatpush.msra.mxu0 0.0
    %255 = vmatpush.msra.mxu0 0.0
    %256 = vmatpush.msra.mxu0 0.0
    %257 = vmatpush.msra.mxu0 0.0
    %258 = vmatpush.msra.mxu0 0.0
    %259 = vmatpush.msra.mxu0 %v239
    %260 = vmatmul.f32.gmra.mxu0 %v242
    %v261 = vpop.f32.mrf.mxu0
    %v262 = vadd.f32 0.0, %v261
    %263 = vdwg.mxu0
    %265 = vrot.lane.b32.xlu0 %v262, 8
    %v266 = vpop.permute.xlu0 %265
    %vm268 = vcmask 130112
    %269 = vst.msk [vmem:[#allocation2] sm:$0xff] %vm268, %v266
    %270 = vrot.lane.b32.xlu0 %v100, 112
    %v271 = vpop.permute.xlu0 %270
    %272 = vrot.lane.b32.xlu0 %v100, 80
    %v273 = vpop.permute.xlu0 %272
    %v274 = vsel %vm108, %v271, 0
    %v276 = vsel %vm108, %v273, 0
    %278 = vmatpush.xpose.msra.mxu0 0.0
    %279 = vmatpush.xpose.msra.mxu0 0.0
    %280 = vmatpush.xpose.msra.mxu0 0.0
    %281 = vmatpush.xpose.msra.mxu0 0.0
    %282 = vmatpush.xpose.msra.mxu0 0.0
    %283 = vmatpush.xpose.msra.mxu0 0.0
    %284 = vmatpush.xpose.msra.mxu0 0.0
    %285 = vmatpush.xpose.msra.mxu0 0.0
    %286 = vmatpush.xpose.msra.mxu0 0.0
    %287 = vmatpush.xpose.msra.mxu0 0.0
    %288 = vmatpush.xpose.msra.mxu0 0.0
    %289 = vmatpush.xpose.msra.mxu0 0.0
    %290 = vmatpush.xpose.msra.mxu0 0.0
    %291 = vmatpush.xpose.msra.mxu0 0.0
    %292 = vmatpush.xpose.msra.mxu0 0.0
    %293 = vmatpush.xpose.msra.mxu0 %v276
    %294 = vmatmul.f32.gmra.mxu0 %v274
    %v295 = vpop.f32.mrf.mxu0
    %v296 = vadd.f32 0.0, %v295
    %297 = vdwg.mxu0
    %v298 = vmul.f32 %v296, 0.35355338
    %v299 = vsel %vm108, %v298, -inf
    %300 = vmax.xlane.f32.xlu0 %v299
    %v301 = vpop.xlane.xlu0 %300
    %v302 = vsub.f32 %v298, %v301
    %v303 = vmul.f32 %v302, 1.442695
    %v304 = vpow.pop %v303
    %v305 = vsel %vm108, %v304, 0.0
    %306 = vadd.xlane.f32.xlu0 %v305
    %v307 = vpop.xlane.xlu0 %306
    %v308 = vrcp.pop %v307
    %v309 = vmul.f32 %v307, %v308
    %v310 = vsub.f32 1.0, %v309
    %v311 = vmul.f32 %v308, %v310
    %v312 = vadd.f32 %v308, %v311
    %vm313 = vweird.f32 %v307
    %vm314 = vweird.f32 %v308
    %vm315 = vmor %vm313, %vm314
    %v316 = vsel %vm315, %v308, %v312
    %v317 = vand.u32 2147483647, %v307
    %vm318 = vcmp.eq.f32.partialorder %v317, 8.507059e+37
    %v319 = vand.u32 %v307, 2147483648
    %v320 = vor.u32 1.1754944e-38, %v319
    %v321 = vsel %vm318, %v320, %v316
    %v322 = vmul.f32 %v304, %v321
    %323 = vrot.lane.b32.xlu0 %v100, 48
    %v324 = vpop.permute.xlu0 %323
    %v327 = vsel %vm108, %v322, 0
    %329 = vmatpush.msra.mxu0 0.0
    %330 = vmatpush.msra.mxu0 0.0
    %331 = vmatpush.msra.mxu0 0.0
    %332 = vmatpush.msra.mxu0 0.0
    %333 = vmatpush.msra.mxu0 0.0
    %334 = vmatpush.msra.mxu0 0.0
    %335 = vmatpush.msra.mxu0 0.0
    %336 = vmatpush.msra.mxu0 0.0
    %337 = vmatpush.msra.mxu0 0.0
    %338 = vmatpush.msra.mxu0 0.0
    %339 = vmatpush.msra.mxu0 0.0
    %340 = vmatpush.msra.mxu0 0.0
    %341 = vmatpush.msra.mxu0 0.0
    %342 = vmatpush.msra.mxu0 0.0
    %343 = vmatpush.msra.mxu0 0.0
    %344 = vmatpush.msra.mxu0 %v324
    %345 = vmatmul.f32.gmra.mxu0 %v327
    %v346 = vpop.f32.mrf.mxu0
    %v347 = vadd.f32 0.0, %v346
    %348 = vdwg.mxu0
    %350 = vrot.lane.b32.xlu0 %v347, 16
    %v351 = vpop.permute.xlu0 %350
    %vm353 = vcmask 195712
    %354 = vst.msk [vmem:[#allocation2] sm:$0xff] %vm353, %v351
    %355 = vrot.lane.b32.xlu0 %v100, 104
    %v356 = vpop.permute.xlu0 %355
    %357 = vrot.lane.b32.xlu0 %v100, 72
    %v358 = vpop.permute.xlu0 %357
    %v359 = vsel %vm108, %v356, 0
    %v361 = vsel %vm108, %v358, 0
    %363 = vmatpush.xpose.msra.mxu0 0.0
    %364 = vmatpush.xpose.msra.mxu0 0.0
    %365 = vmatpush.xpose.msra.mxu0 0.0
    %366 = vmatpush.xpose.msra.mxu0 0.0
    %367 = vmatpush.xpose.msra.mxu0 0.0
    %368 = vmatpush.xpose.msra.mxu0 0.0
    %369 = vmatpush.xpose.msra.mxu0 0.0
    %370 = vmatpush.xpose.msra.mxu0 0.0
    %371 = vmatpush.xpose.msra.mxu0 0.0
    %372 = vmatpush.xpose.msra.mxu0 0.0
    %373 = vmatpush.xpose.msra.mxu0 0.0
    %374 = vmatpush.xpose.msra.mxu0 0.0
    %375 = vmatpush.xpose.msra.mxu0 0.0
    %376 = vmatpush.xpose.msra.mxu0 0.0
    %377 = vmatpush.xpose.msra.mxu0 0.0
    %378 = vmatpush.xpose.msra.mxu0 %v361
    %379 = vmatmul.f32.gmra.mxu0 %v359
    %v380 = vpop.f32.mrf.mxu0
    %v381 = vadd.f32 0.0, %v380
    %382 = vdwg.mxu0
    %v383 = vmul.f32 %v381, 0.35355338
    %v384 = vsel %vm108, %v383, -inf
    %385 = vmax.xlane.f32.xlu0 %v384
    %v386 = vpop.xlane.xlu0 %385
    %v387 = vsub.f32 %v383, %v386
    %v388 = vmul.f32 %v387, 1.442695
    %v389 = vpow.pop %v388
    %v390 = vsel %vm108, %v389, 0.0
    %391 = vadd.xlane.f32.xlu0 %v390
    %v392 = vpop.xlane.xlu0 %391
    %v393 = vrcp.pop %v392
    %v394 = vmul.f32 %v392, %v393
    %v395 = vsub.f32 1.0, %v394
    %v396 = vmul.f32 %v393, %v395
    %v397 = vadd.f32 %v393, %v396
    %vm398 = vweird.f32 %v392
    %vm399 = vweird.f32 %v393
    %vm400 = vmor %vm398, %vm399
    %v401 = vsel %vm400, %v393, %v397
    %v402 = vand.u32 2147483647, %v392
    %vm403 = vcmp.eq.f32.partialorder %v402, 8.507059e+37
    %v404 = vand.u32 %v392, 2147483648
    %v405 = vor.u32 1.1754944e-38, %v404
    %v406 = vsel %vm403, %v405, %v401
    %v407 = vmul.f32 %v389, %v406
    %408 = vrot.lane.b32.xlu0 %v100, 40
    %v409 = vpop.permute.xlu0 %408
    %v412 = vsel %vm108, %v407, 0
    %414 = vmatpush.msra.mxu0 0.0
    %415 = vmatpush.msra.mxu0 0.0
    %416 = vmatpush.msra.mxu0 0.0
    %417 = vmatpush.msra.mxu0 0.0
    %418 = vmatpush.msra.mxu0 0.0
    %419 = vmatpush.msra.mxu0 0.0
    %420 = vmatpush.msra.mxu0 0.0
    %421 = vmatpush.msra.mxu0 0.0
    %422 = vmatpush.msra.mxu0 0.0
    %423 = vmatpush.msra.mxu0 0.0
    %424 = vmatpush.msra.mxu0 0.0
    %425 = vmatpush.msra.mxu0 0.0
    %426 = vmatpush.msra.mxu0 0.0
    %427 = vmatpush.msra.mxu0 0.0
    %428 = vmatpush.msra.mxu0 0.0
    %429 = vmatpush.msra.mxu0 %v409
    %430 = vmatmul.f32.gmra.mxu0 %v412
    %v431 = vpop.f32.mrf.mxu0
    %v432 = vadd.f32 0.0, %v431
    %433 = vdwg.mxu0
    %435 = vrot.lane.b32.xlu0 %v432, 24
    %v436 = vpop.permute.xlu0 %435
    %vm438 = vcmask 261312
    %439 = vst.msk [vmem:[#allocation2] sm:$0xff] %vm438, %v436
    %441 = vrot.lane.b32.xlu0 %v103, 96
    %v442 = vpop.permute.xlu0 %441
    %v443 = vsel %vm108, %v103, 0
    %v445 = vsel %vm108, %v442, 0
    %447 = vmatpush.xpose.msra.mxu0 0.0
    %448 = vmatpush.xpose.msra.mxu0 0.0
    %449 = vmatpush.xpose.msra.mxu0 0.0
    %450 = vmatpush.xpose.msra.mxu0 0.0
    %451 = vmatpush.xpose.msra.mxu0 0.0
    %452 = vmatpush.xpose.msra.mxu0 0.0
    %453 = vmatpush.xpose.msra.mxu0 0.0
    %454 = vmatpush.xpose.msra.mxu0 0.0
    %455 = vmatpush.xpose.msra.mxu0 0.0
    %456 = vmatpush.xpose.msra.mxu0 0.0
    %457 = vmatpush.xpose.msra.mxu0 0.0
    %458 = vmatpush.xpose.msra.mxu0 0.0
    %459 = vmatpush.xpose.msra.mxu0 0.0
    %460 = vmatpush.xpose.msra.mxu0 0.0
    %461 = vmatpush.xpose.msra.mxu0 0.0
    %462 = vmatpush.xpose.msra.mxu0 %v445
    %463 = vmatmul.f32.gmra.mxu0 %v443
    %v464 = vpop.f32.mrf.mxu0
    %v465 = vadd.f32 0.0, %v464
    %466 = vdwg.mxu0
    %v467 = vmul.f32 %v465, 0.35355338
    %v468 = vsel %vm108, %v467, -inf
    %469 = vmax.xlane.f32.xlu0 %v468
    %v470 = vpop.xlane.xlu0 %469
    %v471 = vsub.f32 %v467, %v470
    %v472 = vmul.f32 %v471, 1.442695
    %v473 = vpow.pop %v472
    %v474 = vsel %vm108, %v473, 0.0
    %475 = vadd.xlane.f32.xlu0 %v474
    %v476 = vpop.xlane.xlu0 %475
    %v477 = vrcp.pop %v476
    %v478 = vmul.f32 %v476, %v477
    %v479 = vsub.f32 1.0, %v478
    %v480 = vmul.f32 %v477, %v479
    %v481 = vadd.f32 %v477, %v480
    %vm482 = vweird.f32 %v476
    %vm483 = vweird.f32 %v477
    %vm484 = vmor %vm482, %vm483
    %v485 = vsel %vm484, %v477, %v481
    %v486 = vand.u32 2147483647, %v476
    %vm487 = vcmp.eq.f32.partialorder %v486, 8.507059e+37
    %v488 = vand.u32 %v476, 2147483648
    %v489 = vor.u32 1.1754944e-38, %v488
    %v490 = vsel %vm487, %v489, %v485
    %v491 = vmul.f32 %v473, %v490
    %492 = vrot.lane.b32.xlu0 %v103, 64
    %v493 = vpop.permute.xlu0 %492
    %v496 = vsel %vm108, %v491, 0
    %498 = vmatpush.msra.mxu0 0.0
    %499 = vmatpush.msra.mxu0 0.0
    %500 = vmatpush.msra.mxu0 0.0
    %501 = vmatpush.msra.mxu0 0.0
    %502 = vmatpush.msra.mxu0 0.0
    %503 = vmatpush.msra.mxu0 0.0
    %504 = vmatpush.msra.mxu0 0.0
    %505 = vmatpush.msra.mxu0 0.0
    %506 = vmatpush.msra.mxu0 0.0
    %507 = vmatpush.msra.mxu0 0.0
    %508 = vmatpush.msra.mxu0 0.0
    %509 = vmatpush.msra.mxu0 0.0
    %510 = vmatpush.msra.mxu0 0.0
    %511 = vmatpush.msra.mxu0 0.0
    %512 = vmatpush.msra.mxu0 0.0
    %513 = vmatpush.msra.mxu0 %v493
    %514 = vmatmul.f32.gmra.mxu0 %v496
    %v515 = vpop.f32.mrf.mxu0
    %v516 = vadd.f32 0.0, %v515
    %517 = vdwg.mxu0
    %518 = vst.msk [vmem:[#allocation2 + $0x8] sm:$0xff] %vm108, %v516
    %519 = vrot.lane.b32.xlu0 %v103, 120
    %v520 = vpop.permute.xlu0 %519
    %521 = vrot.lane.b32.xlu0 %v103, 88
    %v522 = vpop.permute.xlu0 %521
    %v523 = vsel %vm108, %v520, 0
    %v525 = vsel %vm108, %v522, 0
    %527 = vmatpush.xpose.msra.mxu0 0.0
    %528 = vmatpush.xpose.msra.mxu0 0.0
    %529 = vmatpush.xpose.msra.mxu0 0.0
    %530 = vmatpush.xpose.msra.mxu0 0.0
    %531 = vmatpush.xpose.msra.mxu0 0.0
    %532 = vmatpush.xpose.msra.mxu0 0.0
    %533 = vmatpush.xpose.msra.mxu0 0.0
    %534 = vmatpush.xpose.msra.mxu0 0.0
    %535 = vmatpush.xpose.msra.mxu0 0.0
    %536 = vmatpush.xpose.msra.mxu0 0.0
    %537 = vmatpush.xpose.msra.mxu0 0.0
    %538 = vmatpush.xpose.msra.mxu0 0.0
    %539 = vmatpush.xpose.msra.mxu0 0.0
    %540 = vmatpush.xpose.msra.mxu0 0.0
    %541 = vmatpush.xpose.msra.mxu0 0.0
    %542 = vmatpush.xpose.msra.mxu0 %v525
    %543 = vmatmul.f32.gmra.mxu0 %v523
    %v544 = vpop.f32.mrf.mxu0
    %v545 = vadd.f32 0.0, %v544
    %546 = vdwg.mxu0
    %v547 = vmul.f32 %v545, 0.35355338
    %v548 = vsel %vm108, %v547, -inf
    %549 = vmax.xlane.f32.xlu0 %v548
    %v550 = vpop.xlane.xlu0 %549
    %v551 = vsub.f32 %v547, %v550
    %v552 = vmul.f32 %v551, 1.442695
    %v553 = vpow.pop %v552
    %v554 = vsel %vm108, %v553, 0.0
    %555 = vadd.xlane.f32.xlu0 %v554
    %v556 = vpop.xlane.xlu0 %555
    %v557 = vrcp.pop %v556
    %v558 = vmul.f32 %v556, %v557
    %v559 = vsub.f32 1.0, %v558
    %v560 = vmul.f32 %v557, %v559
    %v561 = vadd.f32 %v557, %v560
    %vm562 = vweird.f32 %v556
    %vm563 = vweird.f32 %v557
    %vm564 = vmor %vm562, %vm563
    %v565 = vsel %vm564, %v557, %v561
    %v566 = vand.u32 2147483647, %v556
    %vm567 = vcmp.eq.f32.partialorder %v566, 8.507059e+37
    %v568 = vand.u32 %v556, 2147483648
    %v569 = vor.u32 1.1754944e-38, %v568
    %v570 = vsel %vm567, %v569, %v565
    %v571 = vmul.f32 %v553, %v570
    %572 = vrot.lane.b32.xlu0 %v103, 56
    %v573 = vpop.permute.xlu0 %572
    %v576 = vsel %vm108, %v571, 0
    %578 = vmatpush.msra.mxu0 0.0
    %579 = vmatpush.msra.mxu0 0.0
    %580 = vmatpush.msra.mxu0 0.0
    %581 = vmatpush.msra.mxu0 0.0
    %582 = vmatpush.msra.mxu0 0.0
    %583 = vmatpush.msra.mxu0 0.0
    %584 = vmatpush.msra.mxu0 0.0
    %585 = vmatpush.msra.mxu0 0.0
    %586 = vmatpush.msra.mxu0 0.0
    %587 = vmatpush.msra.mxu0 0.0
    %588 = vmatpush.msra.mxu0 0.0
    %589 = vmatpush.msra.mxu0 0.0
    %590 = vmatpush.msra.mxu0 0.0
    %591 = vmatpush.msra.mxu0 0.0
    %592 = vmatpush.msra.mxu0 0.0
    %593 = vmatpush.msra.mxu0 %v573
    %594 = vmatmul.f32.gmra.mxu0 %v576
    %v595 = vpop.f32.mrf.mxu0
    %v596 = vadd.f32 0.0, %v595
    %597 = vdwg.mxu0
    %599 = vrot.lane.b32.xlu0 %v596, 8
    %v600 = vpop.permute.xlu0 %599
    %602 = vst.msk [vmem:[#allocation2 + $0x8] sm:$0xff] %vm268, %v600
    %603 = vrot.lane.b32.xlu0 %v103, 112
    %v604 = vpop.permute.xlu0 %603
    %605 = vrot.lane.b32.xlu0 %v103, 80
    %v606 = vpop.permute.xlu0 %605
    %v607 = vsel %vm108, %v604, 0
    %v609 = vsel %vm108, %v606, 0
    %611 = vmatpush.xpose.msra.mxu0 0.0
    %612 = vmatpush.xpose.msra.mxu0 0.0
    %613 = vmatpush.xpose.msra.mxu0 0.0
    %614 = vmatpush.xpose.msra.mxu0 0.0
    %615 = vmatpush.xpose.msra.mxu0 0.0
    %616 = vmatpush.xpose.msra.mxu0 0.0
    %617 = vmatpush.xpose.msra.mxu0 0.0
    %618 = vmatpush.xpose.msra.mxu0 0.0
    %619 = vmatpush.xpose.msra.mxu0 0.0
    %620 = vmatpush.xpose.msra.mxu0 0.0
    %621 = vmatpush.xpose.msra.mxu0 0.0
    %622 = vmatpush.xpose.msra.mxu0 0.0
    %623 = vmatpush.xpose.msra.mxu0 0.0
    %624 = vmatpush.xpose.msra.mxu0 0.0
    %625 = vmatpush.xpose.msra.mxu0 0.0
    %626 = vmatpush.xpose.msra.mxu0 %v609
    %627 = vmatmul.f32.gmra.mxu0 %v607
    %v628 = vpop.f32.mrf.mxu0
    %v629 = vadd.f32 0.0, %v628
    %630 = vdwg.mxu0
    %v631 = vmul.f32 %v629, 0.35355338
    %v632 = vsel %vm108, %v631, -inf
    %633 = vmax.xlane.f32.xlu0 %v632
    %v634 = vpop.xlane.xlu0 %633
    %v635 = vsub.f32 %v631, %v634
    %v636 = vmul.f32 %v635, 1.442695
    %v637 = vpow.pop %v636
    %v638 = vsel %vm108, %v637, 0.0
    %639 = vadd.xlane.f32.xlu0 %v638
    %v640 = vpop.xlane.xlu0 %639
    %v641 = vrcp.pop %v640
    %v642 = vmul.f32 %v640, %v641
    %v643 = vsub.f32 1.0, %v642
    %v644 = vmul.f32 %v641, %v643
    %v645 = vadd.f32 %v641, %v644
    %vm646 = vweird.f32 %v640
    %vm647 = vweird.f32 %v641
    %vm648 = vmor %vm646, %vm647
    %v649 = vsel %vm648, %v641, %v645
    %v650 = vand.u32 2147483647, %v640
    %vm651 = vcmp.eq.f32.partialorder %v650, 8.507059e+37
    %v652 = vand.u32 %v640, 2147483648
    %v653 = vor.u32 1.1754944e-38, %v652
    %v654 = vsel %vm651, %v653, %v649
    %v655 = vmul.f32 %v637, %v654
    %656 = vrot.lane.b32.xlu0 %v103, 48
    %v657 = vpop.permute.xlu0 %656
    %v660 = vsel %vm108, %v655, 0
    %662 = vmatpush.msra.mxu0 0.0
    %663 = vmatpush.msra.mxu0 0.0
    %664 = vmatpush.msra.mxu0 0.0
    %665 = vmatpush.msra.mxu0 0.0
    %666 = vmatpush.msra.mxu0 0.0
    %667 = vmatpush.msra.mxu0 0.0
    %668 = vmatpush.msra.mxu0 0.0
    %669 = vmatpush.msra.mxu0 0.0
    %670 = vmatpush.msra.mxu0 0.0
    %671 = vmatpush.msra.mxu0 0.0
    %672 = vmatpush.msra.mxu0 0.0
    %673 = vmatpush.msra.mxu0 0.0
    %674 = vmatpush.msra.mxu0 0.0
    %675 = vmatpush.msra.mxu0 0.0
    %676 = vmatpush.msra.mxu0 0.0
    %677 = vmatpush.msra.mxu0 %v657
    %678 = vmatmul.f32.gmra.mxu0 %v660
    %v679 = vpop.f32.mrf.mxu0
    %v680 = vadd.f32 0.0, %v679
    %681 = vdwg.mxu0
    %683 = vrot.lane.b32.xlu0 %v680, 16
    %v684 = vpop.permute.xlu0 %683
    %686 = vst.msk [vmem:[#allocation2 + $0x8] sm:$0xff] %vm353, %v684
    %687 = vrot.lane.b32.xlu0 %v103, 104
    %v688 = vpop.permute.xlu0 %687
    %689 = vrot.lane.b32.xlu0 %v103, 72
    %v690 = vpop.permute.xlu0 %689
    %v691 = vsel %vm108, %v688, 0
    %v693 = vsel %vm108, %v690, 0
    %695 = vmatpush.xpose.msra.mxu0 0.0
    %696 = vmatpush.xpose.msra.mxu0 0.0
    %697 = vmatpush.xpose.msra.mxu0 0.0
    %698 = vmatpush.xpose.msra.mxu0 0.0
    %699 = vmatpush.xpose.msra.mxu0 0.0
    %700 = vmatpush.xpose.msra.mxu0 0.0
    %701 = vmatpush.xpose.msra.mxu0 0.0
    %702 = vmatpush.xpose.msra.mxu0 0.0
    %703 = vmatpush.xpose.msra.mxu0 0.0
    %704 = vmatpush.xpose.msra.mxu0 0.0
    %705 = vmatpush.xpose.msra.mxu0 0.0
    %706 = vmatpush.xpose.msra.mxu0 0.0
    %707 = vmatpush.xpose.msra.mxu0 0.0
    %708 = vmatpush.xpose.msra.mxu0 0.0
    %709 = vmatpush.xpose.msra.mxu0 0.0
    %710 = vmatpush.xpose.msra.mxu0 %v693
    %711 = vmatmul.f32.gmra.mxu0 %v691
    %v712 = vpop.f32.mrf.mxu0
    %v713 = vadd.f32 0.0, %v712
    %714 = vdwg.mxu0
    %v715 = vmul.f32 %v713, 0.35355338
    %v716 = vsel %vm108, %v715, -inf
    %717 = vmax.xlane.f32.xlu0 %v716
    %v718 = vpop.xlane.xlu0 %717
    %v719 = vsub.f32 %v715, %v718
    %v720 = vmul.f32 %v719, 1.442695
    %v721 = vpow.pop %v720
    %v722 = vsel %vm108, %v721, 0.0
    %723 = vadd.xlane.f32.xlu0 %v722
    %v724 = vpop.xlane.xlu0 %723
    %v725 = vrcp.pop %v724
    %v726 = vmul.f32 %v724, %v725
    %v727 = vsub.f32 1.0, %v726
    %v728 = vmul.f32 %v725, %v727
    %v729 = vadd.f32 %v725, %v728
    %vm730 = vweird.f32 %v724
    %vm731 = vweird.f32 %v725
    %vm732 = vmor %vm730, %vm731
    %v733 = vsel %vm732, %v725, %v729
    %v734 = vand.u32 2147483647, %v724
    %vm735 = vcmp.eq.f32.partialorder %v734, 8.507059e+37
    %v736 = vand.u32 %v724, 2147483648
    %v737 = vor.u32 1.1754944e-38, %v736
    %v738 = vsel %vm735, %v737, %v733
    %v739 = vmul.f32 %v721, %v738
    %740 = vrot.lane.b32.xlu0 %v103, 40
    %v741 = vpop.permute.xlu0 %740
    %v744 = vsel %vm108, %v739, 0
    %746 = vmatpush.msra.mxu0 0.0
    %747 = vmatpush.msra.mxu0 0.0
    %748 = vmatpush.msra.mxu0 0.0
    %749 = vmatpush.msra.mxu0 0.0
    %750 = vmatpush.msra.mxu0 0.0
    %751 = vmatpush.msra.mxu0 0.0
    %752 = vmatpush.msra.mxu0 0.0
    %753 = vmatpush.msra.mxu0 0.0
    %754 = vmatpush.msra.mxu0 0.0
    %755 = vmatpush.msra.mxu0 0.0
    %756 = vmatpush.msra.mxu0 0.0
    %757 = vmatpush.msra.mxu0 0.0
    %758 = vmatpush.msra.mxu0 0.0
    %759 = vmatpush.msra.mxu0 0.0
    %760 = vmatpush.msra.mxu0 0.0
    %761 = vmatpush.msra.mxu0 %v741
    %762 = vmatmul.f32.gmra.mxu0 %v744
    %v763 = vpop.f32.mrf.mxu0
    %v764 = vadd.f32 0.0, %v763
    %765 = vdwg.mxu0
    %767 = vrot.lane.b32.xlu0 %v764, 24
    %v768 = vpop.permute.xlu0 %767
    %770 = vst.msk [vmem:[#allocation2 + $0x8] sm:$0xff] %vm438, %v768
    %v771 = vld [vmem:[#allocation2] sm:$0xff]
    %v772 = vld [vmem:[#allocation2 + $0x8] sm:$0xff]
    %v773 = vperm.slane %v67, 0
    %v775 = vsel %vm75, %v771, 0
    %v778 = vsel %vm75, %v772, 0
    %780 = vmatpush.msra.mxu0 0.0
    %781 = vmatpush.msra.mxu0 0.0
    %782 = vmatpush.msra.mxu0 0.0
    %783 = vmatpush.msra.mxu0 0.0
    %784 = vmatpush.msra.mxu0 0.0
    %785 = vmatpush.msra.mxu0 0.0
    %786 = vmatpush.msra.mxu0 0.0
    %787 = vmatpush.msra.mxu0 0.0
    %788 = vmatpush.msra.mxu0 0.0
    %789 = vmatpush.msra.mxu0 0.0
    %790 = vmatpush.msra.mxu0 0.0
    %791 = vmatpush.msra.mxu0 0.0
    %792 = vmatpush.msra.mxu0 %v53
    %793 = vmatpush.msra.mxu0 %v52
    %794 = vmatpush.msra.mxu0 %v51
    %795 = vmatpush.msra.mxu0 %v50
    %796 = vmatmul.f32.gmra.mxu0 %v775
    %v797 = vpop.f32.mrf.mxu0
    %v798 = vadd.f32 %v773, %v797
    %799 = vmatmul.f32.gmra.mxu0 %v778
    %v800 = vpop.f32.mrf.mxu0
    %v801 = vadd.f32 %v773, %v800
    %802 = vdwg.mxu0
    %v803 = vadd.f32 %v44, %v798
    %v804 = vadd.f32 %v45, %v801
    %v805 = vsel %vm75, %v803, 0.0
    %806 = vadd.xlane.f32.xlu0 %v805
    %v807 = vpop.xlane.xlu0 %806
    %v808 = vsel %vm75, %v804, 0.0
    %809 = vadd.xlane.f32.xlu0 %v808
    %v810 = vpop.xlane.xlu0 %809
    %v811 = vrcp.pop 32.0
    %v812 = vmul.f32 32.0, %v811
    %v813 = vsub.f32 1.0, %v812
    %v814 = vmul.f32 %v811, %v813
    %v815 = vadd.f32 %v811, %v814
    %vm816 = vweird.f32 %v811
    %v817 = vsel %vm816, %v811, %v815
    %v818 = vmul.f32 %v807, %v817
    %v819 = vmul.f32 %v810, %v817
    %v820 = vsub.f32 %v803, %v818
    %v821 = vsub.f32 %v804, %v819
    %v822 = vmul.f32 %v820, %v820
    %v823 = vmul.f32 %v821, %v821
    %v824 = vsel %vm75, %v822, 0.0
    %825 = vadd.xlane.f32.xlu0 %v824
    %v826 = vpop.xlane.xlu0 %825
    %v827 = vsel %vm75, %v823, 0.0
    %828 = vadd.xlane.f32.xlu0 %v827
    %v829 = vpop.xlane.xlu0 %828
    %v830 = vmul.f32 %v826, %v817
    %v831 = vmul.f32 %v829, %v817
    %v832 = vadd.f32 %v830, 1e-05
    %v833 = vadd.f32 %v831, 1e-05
    %v834 = vrsqrt.pop %v832
    %v835 = vmul.f32 %v834, %v832
    %v836 = vmul.f32 %v835, %v834
    %v837 = vmul.f32 0.5, %v836
    %v838 = vsub.f32 1.5, %v837
    %v839 = vmul.f32 %v834, %v838
    %vm840 = vweird.f32 %v832
    %vm841 = vweird.f32 %v834
    %vm842 = vmor %vm840, %vm841
    %v843 = vsel %vm842, %v834, %v839
    %v844 = vrsqrt.pop %v833
    %v845 = vmul.f32 %v844, %v833
    %v846 = vmul.f32 %v845, %v844
    %v847 = vmul.f32 0.5, %v846
    %v848 = vsub.f32 1.5, %v847
    %v849 = vmul.f32 %v844, %v848
    %vm850 = vweird.f32 %v833
    %vm851 = vweird.f32 %v844
    %vm852 = vmor %vm850, %vm851
    %v853 = vsel %vm852, %v844, %v849
    %v854 = vmul.f32 %v820, %v843
    %v855 = vmul.f32 %v821, %v853
    %v856 = vperm.slane %v70, 0
    %v857 = vmul.f32 %v854, %v856
    %v858 = vmul.f32 %v855, %v856
    %v859 = vperm.slane %v71, 0
    %v860 = vadd.f32 %v857, %v859
    %v861 = vadd.f32 %v858, %v859
    %v862 = vperm.slane %v68, 0
    %v864 = vsel %vm75, %v860, 0
    %v867 = vsel %vm75, %v861, 0
    %869 = vmatpush.msra.mxu0 0.0
    %870 = vmatpush.msra.mxu0 0.0
    %871 = vmatpush.msra.mxu0 0.0
    %872 = vmatpush.msra.mxu0 0.0
    %873 = vmatpush.msra.mxu0 0.0
    %874 = vmatpush.msra.mxu0 0.0
    %875 = vmatpush.msra.mxu0 0.0
    %876 = vmatpush.msra.mxu0 0.0
    %877 = vmatpush.msra.mxu0 0.0
    %878 = vmatpush.msra.mxu0 0.0
    %879 = vmatpush.msra.mxu0 0.0
    %880 = vmatpush.msra.mxu0 0.0
    %881 = vmatpush.msra.mxu0 %v57
    %882 = vmatpush.msra.mxu0 %v56
    %883 = vmatpush.msra.mxu0 %v55
    %884 = vmatpush.msra.mxu0 %v54
    %885 = vmatmul.f32.gmra.mxu0 %v864
    %v886 = vpop.f32.mrf.mxu0
    %v887 = vadd.f32 %v862, %v886
    %888 = vmatmul.f32.gmra.mxu0 %v867
    %v889 = vpop.f32.mrf.mxu0
    %v890 = vadd.f32 %v862, %v889
    %891 = vdwg.mxu0
    %v892 = vmax.f32 %v887, 0.0
    %v893 = vmax.f32 %v890, 0.0
    %v894 = vperm.slane %v69, 0
    %vm895 = vcmask 523264
    %v897 = vsel %vm895, %v892, 0
    %v900 = vsel %vm895, %v893, 0
    %902 = vmatpush.msra.mxu0 0.0
    %903 = vmatpush.msra.mxu0 0.0
    %904 = vmatpush.msra.mxu0 0.0
    %905 = vmatpush.msra.mxu0 0.0
    %906 = vmatpush.msra.mxu0 0.0
    %907 = vmatpush.msra.mxu0 0.0
    %908 = vmatpush.msra.mxu0 0.0
    %909 = vmatpush.msra.mxu0 0.0
    %910 = vmatpush.msra.mxu0 %v65
    %911 = vmatpush.msra.mxu0 %v64
    %912 = vmatpush.msra.mxu0 %v63
    %913 = vmatpush.msra.mxu0 %v62
    %914 = vmatpush.msra.mxu0 %v61
    %915 = vmatpush.msra.mxu0 %v60
    %916 = vmatpush.msra.mxu0 %v59
    %917 = vmatpush.msra.mxu0 %v58
    %918 = vmatmul.f32.gmra.mxu0 %v897
    %v919 = vpop.f32.mrf.mxu0
    %v920 = vadd.f32 %v894, %v919
    %921 = vmatmul.f32.gmra.mxu0 %v900
    %v922 = vpop.f32.mrf.mxu0
    %v923 = vadd.f32 %v894, %v922
    %924 = vdwg.mxu0
    %v925 = vadd.f32 %v860, %v920
    %v926 = vadd.f32 %v861, %v923
    %v927 = vsel %vm75, %v925, 0.0
    %928 = vadd.xlane.f32.xlu0 %v927
    %v929 = vpop.xlane.xlu0 %928
    %v930 = vsel %vm75, %v926, 0.0
    %931 = vadd.xlane.f32.xlu0 %v930
    %v932 = vpop.xlane.xlu0 %931
    %v933 = vmul.f32 %v929, %v817
    %v934 = vmul.f32 %v932, %v817
    %v935 = vsub.f32 %v925, %v933
    %v936 = vsub.f32 %v926, %v934
    %v937 = vmul.f32 %v935, %v935
    %v938 = vmul.f32 %v936, %v936
    %v939 = vsel %vm75, %v937, 0.0
    %940 = vadd.xlane.f32.xlu0 %v939
    %v941 = vpop.xlane.xlu0 %940
    %v942 = vsel %vm75, %v938, 0.0
    %943 = vadd.xlane.f32.xlu0 %v942
    %v944 = vpop.xlane.xlu0 %943
    %v945 = vmul.f32 %v941, %v817
    %v946 = vmul.f32 %v944, %v817
    %v947 = vadd.f32 %v945, 1e-05
    %v948 = vadd.f32 %v946, 1e-05
    %v949 = vrsqrt.pop %v947
    %v950 = vmul.f32 %v949, %v947
    %v951 = vmul.f32 %v950, %v949
    %v952 = vmul.f32 0.5, %v951
    %v953 = vsub.f32 1.5, %v952
    %v954 = vmul.f32 %v949, %v953
    %vm955 = vweird.f32 %v947
    %vm956 = vweird.f32 %v949
    %vm957 = vmor %vm955, %vm956
    %v958 = vsel %vm957, %v949, %v954
    %v959 = vrsqrt.pop %v948
    %v960 = vmul.f32 %v959, %v948
    %v961 = vmul.f32 %v960, %v959
    %v962 = vmul.f32 0.5, %v961
    %v963 = vsub.f32 1.5, %v962
    %v964 = vmul.f32 %v959, %v963
    %vm965 = vweird.f32 %v948
    %vm966 = vweird.f32 %v959
    %vm967 = vmor %vm965, %vm966
    %v968 = vsel %vm967, %v959, %v964
    %v969 = vmul.f32 %v935, %v958
    %v970 = vmul.f32 %v936, %v968
    %v971 = vperm.slane %v72, 0
    %v972 = vmul.f32 %v969, %v971
    %v973 = vmul.f32 %v970, %v971
    %v974 = vperm.slane %v73, 0
    %v975 = vadd.f32 %v972, %v974
    %v976 = vadd.f32 %v973, %v974
    %s977 = scalar_lea.vmem [#allocation6], 168
    %v978 = vld [vmem:[%s977] sm:$0xff]
    %v979 = vld [vmem:[%s977 + $0x8] sm:$0xff]
    %v980 = vld [vmem:[%s977 + $0x10] sm:$0xff]
    %v981 = vld [vmem:[%s977 + $0x18] sm:$0xff]
    %v982 = vld [vmem:[%s977 + $0x20] sm:$0xff]
    %v983 = vld [vmem:[%s977 + $0x28] sm:$0xff]
    %v984 = vld [vmem:[%s977 + $0x30] sm:$0xff]
    %v985 = vld [vmem:[%s977 + $0x38] sm:$0xff]
    %v986 = vld [vmem:[%s977 + $0x40] sm:$0xff]
    %v987 = vld [vmem:[%s977 + $0x48] sm:$0xff]
    %v988 = vld [vmem:[%s977 + $0x50] sm:$0xff]
    %v989 = vld [vmem:[%s977 + $0x58] sm:$0xff]
    %v990 = vld [vmem:[%s977 + $0x60] sm:$0xff]
    %v991 = vld [vmem:[%s977 + $0x68] sm:$0xff]
    %v992 = vld [vmem:[%s977 + $0x70] sm:$0xff]
    %v993 = vld [vmem:[%s977 + $0x78] sm:$0xff]
    %v994 = vld [vmem:[%s977 + $0x80] sm:$0xff]
    %v995 = vld [vmem:[%s977 + $0x88] sm:$0xff]
    %v996 = vld [vmem:[%s977 + $0x90] sm:$0xff]
    %v997 = vld [vmem:[%s977 + $0x98] sm:$0xff]
    %v998 = vld [vmem:[%s977 + $0xa0] sm:$0x1]
    %v999 = vld [vmem:[%s977 + $0xa1] sm:$0x1]
    %v1000 = vld [vmem:[%s977 + $0xa2] sm:$0x1]
    %v1001 = vld [vmem:[%s977 + $0xa3] sm:$0x1]
    %v1002 = vld [vmem:[%s977 + $0xa4] sm:$0x1]
    %v1003 = vld [vmem:[%s977 + $0xa5] sm:$0x1]
    %v1004 = vld [vmem:[%s977 + $0xa6] sm:$0x1]
    %v1005 = vld [vmem:[%s977 + $0xa7] sm:$0x1]
    %v1006 = vperm.slane %v998, 0
    %v1008 = vsel %vm75, %v975, 0
    %v1011 = vsel %vm75, %v976, 0
    %1013 = vmatpush.msra.mxu0 0.0
    %1014 = vmatpush.msra.mxu0 0.0
    %1015 = vmatpush.msra.mxu0 0.0
    %1016 = vmatpush.msra.mxu0 0.0
    %1017 = vmatpush.msra.mxu0 0.0
    %1018 = vmatpush.msra.mxu0 0.0
    %1019 = vmatpush.msra.mxu0 0.0
    %1020 = vmatpush.msra.mxu0 0.0
    %1021 = vmatpush.msra.mxu0 0.0
    %1022 = vmatpush.msra.mxu0 0.0
    %1023 = vmatpush.msra.mxu0 0.0
    %1024 = vmatpush.msra.mxu0 0.0
    %1025 = vmatpush.msra.mxu0 %v981
    %1026 = vmatpush.msra.mxu0 %v980
    %1027 = vmatpush.msra.mxu0 %v979
    %1028 = vmatpush.msra.mxu0 %v978
    %1029 = vmatmul.f32.gmra.mxu0 %v1008
    %v1030 = vpop.f32.mrf.mxu0
    %v1031 = vadd.f32 %v1006, %v1030
    %1032 = vmatmul.f32.gmra.mxu0 %v1011
    %v1033 = vpop.f32.mrf.mxu0
    %v1034 = vadd.f32 %v1006, %v1033
    %1035 = vdwg.mxu0
    %1037 = vrot.lane.b32.xlu0 %v1031, 96
    %v1038 = vpop.permute.xlu0 %1037
    %v1039 = vsel %vm108, %v1031, 0
    %v1041 = vsel %vm108, %v1038, 0
    %1043 = vmatpush.xpose.msra.mxu0 0.0
    %1044 = vmatpush.xpose.msra.mxu0 0.0
    %1045 = vmatpush.xpose.msra.mxu0 0.0
    %1046 = vmatpush.xpose.msra.mxu0 0.0
    %1047 = vmatpush.xpose.msra.mxu0 0.0
    %1048 = vmatpush.xpose.msra.mxu0 0.0
    %1049 = vmatpush.xpose.msra.mxu0 0.0
    %1050 = vmatpush.xpose.msra.mxu0 0.0
    %1051 = vmatpush.xpose.msra.mxu0 0.0
    %1052 = vmatpush.xpose.msra.mxu0 0.0
    %1053 = vmatpush.xpose.msra.mxu0 0.0
    %1054 = vmatpush.xpose.msra.mxu0 0.0
    %1055 = vmatpush.xpose.msra.mxu0 0.0
    %1056 = vmatpush.xpose.msra.mxu0 0.0
    %1057 = vmatpush.xpose.msra.mxu0 0.0
    %1058 = vmatpush.xpose.msra.mxu0 %v1041
    %1059 = vmatmul.f32.gmra.mxu0 %v1039
    %v1060 = vpop.f32.mrf.mxu0
    %v1061 = vadd.f32 0.0, %v1060
    %1062 = vdwg.mxu0
    %v1063 = vmul.f32 %v1061, 0.35355338
    %v1064 = vsel %vm108, %v1063, -inf
    %1065 = vmax.xlane.f32.xlu0 %v1064
    %v1066 = vpop.xlane.xlu0 %1065
    %v1067 = vsub.f32 %v1063, %v1066
    %v1068 = vmul.f32 %v1067, 1.442695
    %v1069 = vpow.pop %v1068
    %v1070 = vsel %vm108, %v1069, 0.0
    %1071 = vadd.xlane.f32.xlu0 %v1070
    %v1072 = vpop.xlane.xlu0 %1071
    %v1073 = vrcp.pop %v1072
    %v1074 = vmul.f32 %v1072, %v1073
    %v1075 = vsub.f32 1.0, %v1074
    %v1076 = vmul.f32 %v1073, %v1075
    %v1077 = vadd.f32 %v1073, %v1076
    %vm1078 = vweird.f32 %v1072
    %vm1079 = vweird.f32 %v1073
    %vm1080 = vmor %vm1078, %vm1079
    %v1081 = vsel %vm1080, %v1073, %v1077
    %v1082 = vand.u32 2147483647, %v1072
    %vm1083 = vcmp.eq.f32.partialorder %v1082, 8.507059e+37
    %v1084 = vand.u32 %v1072, 2147483648
    %v1085 = vor.u32 1.1754944e-38, %v1084
    %v1086 = vsel %vm1083, %v1085, %v1081
    %v1087 = vmul.f32 %v1069, %v1086
    %1088 = vrot.lane.b32.xlu0 %v1031, 64
    %v1089 = vpop.permute.xlu0 %1088
    %v1092 = vsel %vm108, %v1087, 0
    %1094 = vmatpush.msra.mxu0 0.0
    %1095 = vmatpush.msra.mxu0 0.0
    %1096 = vmatpush.msra.mxu0 0.0
    %1097 = vmatpush.msra.mxu0 0.0
    %1098 = vmatpush.msra.mxu0 0.0
    %1099 = vmatpush.msra.mxu0 0.0
    %1100 = vmatpush.msra.mxu0 0.0
    %1101 = vmatpush.msra.mxu0 0.0
    %1102 = vmatpush.msra.mxu0 0.0
    %1103 = vmatpush.msra.mxu0 0.0
    %1104 = vmatpush.msra.mxu0 0.0
    %1105 = vmatpush.msra.mxu0 0.0
    %1106 = vmatpush.msra.mxu0 0.0
    %1107 = vmatpush.msra.mxu0 0.0
    %1108 = vmatpush.msra.mxu0 0.0
    %1109 = vmatpush.msra.mxu0 %v1089
    %1110 = vmatmul.f32.gmra.mxu0 %v1092
    %v1111 = vpop.f32.mrf.mxu0
    %v1112 = vadd.f32 0.0, %v1111
    %1113 = vdwg.mxu0
    %1114 = vst.msk [vmem:[#allocation2] sm:$0xff] %vm108, %v1112
    %1115 = vrot.lane.b32.xlu0 %v1031, 120
    %v1116 = vpop.permute.xlu0 %1115
    %1117 = vrot.lane.b32.xlu0 %v1031, 88
    %v1118 = vpop.permute.xlu0 %1117
    %v1119 = vsel %vm108, %v1116, 0
    %v1121 = vsel %vm108, %v1118, 0
    %1123 = vmatpush.xpose.msra.mxu0 0.0
    %1124 = vmatpush.xpose.msra.mxu0 0.0
    %1125 = vmatpush.xpose.msra.mxu0 0.0
    %1126 = vmatpush.xpose.msra.mxu0 0.0
    %1127 = vmatpush.xpose.msra.mxu0 0.0
    %1128 = vmatpush.xpose.msra.mxu0 0.0
    %1129 = vmatpush.xpose.msra.mxu0 0.0
    %1130 = vmatpush.xpose.msra.mxu0 0.0
    %1131 = vmatpush.xpose.msra.mxu0 0.0
    %1132 = vmatpush.xpose.msra.mxu0 0.0
    %1133 = vmatpush.xpose.msra.mxu0 0.0
    %1134 = vmatpush.xpose.msra.mxu0 0.0
    %1135 = vmatpush.xpose.msra.mxu0 0.0
    %1136 = vmatpush.xpose.msra.mxu0 0.0
    %1137 = vmatpush.xpose.msra.mxu0 0.0
    %1138 = vmatpush.xpose.msra.mxu0 %v1121
    %1139 = vmatmul.f32.gmra.mxu0 %v1119
    %v1140 = vpop.f32.mrf.mxu0
    %v1141 = vadd.f32 0.0, %v1140
    %1142 = vdwg.mxu0
    %v1143 = vmul.f32 %v1141, 0.35355338
    %v1144 = vsel %vm108, %v1143, -inf
    %1145 = vmax.xlane.f32.xlu0 %v1144
    %v1146 = vpop.xlane.xlu0 %1145
    %v1147 = vsub.f32 %v1143, %v1146
    %v1148 = vmul.f32 %v1147, 1.442695
    %v1149 = vpow.pop %v1148
    %v1150 = vsel %vm108, %v1149, 0.0
    %1151 = vadd.xlane.f32.xlu0 %v1150
    %v1152 = vpop.xlane.xlu0 %1151
    %v1153 = vrcp.pop %v1152
    %v1154 = vmul.f32 %v1152, %v1153
    %v1155 = vsub.f32 1.0, %v1154
    %v1156 = vmul.f32 %v1153, %v1155
    %v1157 = vadd.f32 %v1153, %v1156
    %vm1158 = vweird.f32 %v1152
    %vm1159 = vweird.f32 %v1153
    %vm1160 = vmor %vm1158, %vm1159
    %v1161 = vsel %vm1160, %v1153, %v1157
    %v1162 = vand.u32 2147483647, %v1152
    %vm1163 = vcmp.eq.f32.partialorder %v1162, 8.507059e+37
    %v1164 = vand.u32 %v1152, 2147483648
    %v1165 = vor.u32 1.1754944e-38, %v1164
    %v1166 = vsel %vm1163, %v1165, %v1161
    %v1167 = vmul.f32 %v1149, %v1166
    %1168 = vrot.lane.b32.xlu0 %v1031, 56
    %v1169 = vpop.permute.xlu0 %1168
    %v1172 = vsel %vm108, %v1167, 0
    %1174 = vmatpush.msra.mxu0 0.0
    %1175 = vmatpush.msra.mxu0 0.0
    %1176 = vmatpush.msra.mxu0 0.0
    %1177 = vmatpush.msra.mxu0 0.0
    %1178 = vmatpush.msra.mxu0 0.0
    %1179 = vmatpush.msra.mxu0 0.0
    %1180 = vmatpush.msra.mxu0 0.0
    %1181 = vmatpush.msra.mxu0 0.0
    %1182 = vmatpush.msra.mxu0 0.0
    %1183 = vmatpush.msra.mxu0 0.0
    %1184 = vmatpush.msra.mxu0 0.0
    %1185 = vmatpush.msra.mxu0 0.0
    %1186 = vmatpush.msra.mxu0 0.0
    %1187 = vmatpush.msra.mxu0 0.0
    %1188 = vmatpush.msra.mxu0 0.0
    %1189 = vmatpush.msra.mxu0 %v1169
    %1190 = vmatmul.f32.gmra.mxu0 %v1172
    %v1191 = vpop.f32.mrf.mxu0
    %v1192 = vadd.f32 0.0, %v1191
    %1193 = vdwg.mxu0
    %1195 = vrot.lane.b32.xlu0 %v1192, 8
    %v1196 = vpop.permute.xlu0 %1195
    %1198 = vst.msk [vmem:[#allocation2] sm:$0xff] %vm268, %v1196
    %1199 = vrot.lane.b32.xlu0 %v1031, 112
    %v1200 = vpop.permute.xlu0 %1199
    %1201 = vrot.lane.b32.xlu0 %v1031, 80
    %v1202 = vpop.permute.xlu0 %1201
    %v1203 = vsel %vm108, %v1200, 0
    %v1205 = vsel %vm108, %v1202, 0
    %1207 = vmatpush.xpose.msra.mxu0 0.0
    %1208 = vmatpush.xpose.msra.mxu0 0.0
    %1209 = vmatpush.xpose.msra.mxu0 0.0
    %1210 = vmatpush.xpose.msra.mxu0 0.0
    %1211 = vmatpush.xpose.msra.mxu0 0.0
    %1212 = vmatpush.xpose.msra.mxu0 0.0
    %1213 = vmatpush.xpose.msra.mxu0 0.0
    %1214 = vmatpush.xpose.msra.mxu0 0.0
    %1215 = vmatpush.xpose.msra.mxu0 0.0
    %1216 = vmatpush.xpose.msra.mxu0 0.0
    %1217 = vmatpush.xpose.msra.mxu0 0.0
    %1218 = vmatpush.xpose.msra.mxu0 0.0
    %1219 = vmatpush.xpose.msra.mxu0 0.0
    %1220 = vmatpush.xpose.msra.mxu0 0.0
    %1221 = vmatpush.xpose.msra.mxu0 0.0
    %1222 = vmatpush.xpose.msra.mxu0 %v1205
    %1223 = vmatmul.f32.gmra.mxu0 %v1203
    %v1224 = vpop.f32.mrf.mxu0
    %v1225 = vadd.f32 0.0, %v1224
    %1226 = vdwg.mxu0
    %v1227 = vmul.f32 %v1225, 0.35355338
    %v1228 = vsel %vm108, %v1227, -inf
    %1229 = vmax.xlane.f32.xlu0 %v1228
    %v1230 = vpop.xlane.xlu0 %1229
    %v1231 = vsub.f32 %v1227, %v1230
    %v1232 = vmul.f32 %v1231, 1.442695
    %v1233 = vpow.pop %v1232
    %v1234 = vsel %vm108, %v1233, 0.0
    %1235 = vadd.xlane.f32.xlu0 %v1234
    %v1236 = vpop.xlane.xlu0 %1235
    %v1237 = vrcp.pop %v1236
    %v1238 = vmul.f32 %v1236, %v1237
    %v1239 = vsub.f32 1.0, %v1238
    %v1240 = vmul.f32 %v1237, %v1239
    %v1241 = vadd.f32 %v1237, %v1240
    %vm1242 = vweird.f32 %v1236
    %vm1243 = vweird.f32 %v1237
    %vm1244 = vmor %vm1242, %vm1243
    %v1245 = vsel %vm1244, %v1237, %v1241
    %v1246 = vand.u32 2147483647, %v1236
    %vm1247 = vcmp.eq.f32.partialorder %v1246, 8.507059e+37
    %v1248 = vand.u32 %v1236, 2147483648
    %v1249 = vor.u32 1.1754944e-38, %v1248
    %v1250 = vsel %vm1247, %v1249, %v1245
    %v1251 = vmul.f32 %v1233, %v1250
    %1252 = vrot.lane.b32.xlu0 %v1031, 48
    %v1253 = vpop.permute.xlu0 %1252
    %v1256 = vsel %vm108, %v1251, 0
    %1258 = vmatpush.msra.mxu0 0.0
    %1259 = vmatpush.msra.mxu0 0.0
    %1260 = vmatpush.msra.mxu0 0.0
    %1261 = vmatpush.msra.mxu0 0.0
    %1262 = vmatpush.msra.mxu0 0.0
    %1263 = vmatpush.msra.mxu0 0.0
    %1264 = vmatpush.msra.mxu0 0.0
    %1265 = vmatpush.msra.mxu0 0.0
    %1266 = vmatpush.msra.mxu0 0.0
    %1267 = vmatpush.msra.mxu0 0.0
    %1268 = vmatpush.msra.mxu0 0.0
    %1269 = vmatpush.msra.mxu0 0.0
    %1270 = vmatpush.msra.mxu0 0.0
    %1271 = vmatpush.msra.mxu0 0.0
    %1272 = vmatpush.msra.mxu0 0.0
    %1273 = vmatpush.msra.mxu0 %v1253
    %1274 = vmatmul.f32.gmra.mxu0 %v1256
    %v1275 = vpop.f32.mrf.mxu0
    %v1276 = vadd.f32 0.0, %v1275
    %1277 = vdwg.mxu0
    %1279 = vrot.lane.b32.xlu0 %v1276, 16
    %v1280 = vpop.permute.xlu0 %1279
    %1282 = vst.msk [vmem:[#allocation2] sm:$0xff] %vm353, %v1280
    %1283 = vrot.lane.b32.xlu0 %v1031, 104
    %v1284 = vpop.permute.xlu0 %1283
    %1285 = vrot.lane.b32.xlu0 %v1031, 72
    %v1286 = vpop.permute.xlu0 %1285
    %v1287 = vsel %vm108, %v1284, 0
    %v1289 = vsel %vm108, %v1286, 0
    %1291 = vmatpush.xpose.msra.mxu0 0.0
    %1292 = vmatpush.xpose.msra.mxu0 0.0
    %1293 = vmatpush.xpose.msra.mxu0 0.0
    %1294 = vmatpush.xpose.msra.mxu0 0.0
    %1295 = vmatpush.xpose.msra.mxu0 0.0
    %1296 = vmatpush.xpose.msra.mxu0 0.0
    %1297 = vmatpush.xpose.msra.mxu0 0.0
    %1298 = vmatpush.xpose.msra.mxu0 0.0
    %1299 = vmatpush.xpose.msra.mxu0 0.0
    %1300 = vmatpush.xpose.msra.mxu0 0.0
    %1301 = vmatpush.xpose.msra.mxu0 0.0
    %1302 = vmatpush.xpose.msra.mxu0 0.0
    %1303 = vmatpush.xpose.msra.mxu0 0.0
    %1304 = vmatpush.xpose.msra.mxu0 0.0
    %1305 = vmatpush.xpose.msra.mxu0 0.0
    %1306 = vmatpush.xpose.msra.mxu0 %v1289
    %1307 = vmatmul.f32.gmra.mxu0 %v1287
    %v1308 = vpop.f32.mrf.mxu0
    %v1309 = vadd.f32 0.0, %v1308
    %1310 = vdwg.mxu0
    %v1311 = vmul.f32 %v1309, 0.35355338
    %v1312 = vsel %vm108, %v1311, -inf
    %1313 = vmax.xlane.f32.xlu0 %v1312
    %v1314 = vpop.xlane.xlu0 %1313
    %v1315 = vsub.f32 %v1311, %v1314
    %v1316 = vmul.f32 %v1315, 1.442695
    %v1317 = vpow.pop %v1316
    %v1318 = vsel %vm108, %v1317, 0.0
    %1319 = vadd.xlane.f32.xlu0 %v1318
    %v1320 = vpop.xlane.xlu0 %1319
    %v1321 = vrcp.pop %v1320
    %v1322 = vmul.f32 %v1320, %v1321
    %v1323 = vsub.f32 1.0, %v1322
    %v1324 = vmul.f32 %v1321, %v1323
    %v1325 = vadd.f32 %v1321, %v1324
    %vm1326 = vweird.f32 %v1320
    %vm1327 = vweird.f32 %v1321
    %vm1328 = vmor %vm1326, %vm1327
    %v1329 = vsel %vm1328, %v1321, %v1325
    %v1330 = vand.u32 2147483647, %v1320
    %vm1331 = vcmp.eq.f32.partialorder %v1330, 8.507059e+37
    %v1332 = vand.u32 %v1320, 2147483648
    %v1333 = vor.u32 1.1754944e-38, %v1332
    %v1334 = vsel %vm1331, %v1333, %v1329
    %v1335 = vmul.f32 %v1317, %v1334
    %1336 = vrot.lane.b32.xlu0 %v1031, 40
    %v1337 = vpop.permute.xlu0 %1336
    %v1340 = vsel %vm108, %v1335, 0
    %1342 = vmatpush.msra.mxu0 0.0
    %1343 = vmatpush.msra.mxu0 0.0
    %1344 = vmatpush.msra.mxu0 0.0
    %1345 = vmatpush.msra.mxu0 0.0
    %1346 = vmatpush.msra.mxu0 0.0
    %1347 = vmatpush.msra.mxu0 0.0
    %1348 = vmatpush.msra.mxu0 0.0
    %1349 = vmatpush.msra.mxu0 0.0
    %1350 = vmatpush.msra.mxu0 0.0
    %1351 = vmatpush.msra.mxu0 0.0
    %1352 = vmatpush.msra.mxu0 0.0
    %1353 = vmatpush.msra.mxu0 0.0
    %1354 = vmatpush.msra.mxu0 0.0
    %1355 = vmatpush.msra.mxu0 0.0
    %1356 = vmatpush.msra.mxu0 0.0
    %1357 = vmatpush.msra.mxu0 %v1337
    %1358 = vmatmul.f32.gmra.mxu0 %v1340
    %v1359 = vpop.f32.mrf.mxu0
    %v1360 = vadd.f32 0.0, %v1359
    %1361 = vdwg.mxu0
    %1363 = vrot.lane.b32.xlu0 %v1360, 24
    %v1364 = vpop.permute.xlu0 %1363
    %1366 = vst.msk [vmem:[#allocation2] sm:$0xff] %vm438, %v1364
    %1368 = vrot.lane.b32.xlu0 %v1034, 96
    %v1369 = vpop.permute.xlu0 %1368
    %v1370 = vsel %vm108, %v1034, 0
    %v1372 = vsel %vm108, %v1369, 0
    %1374 = vmatpush.xpose.msra.mxu0 0.0
    %1375 = vmatpush.xpose.msra.mxu0 0.0
    %1376 = vmatpush.xpose.msra.mxu0 0.0
    %1377 = vmatpush.xpose.msra.mxu0 0.0
    %1378 = vmatpush.xpose.msra.mxu0 0.0
    %1379 = vmatpush.xpose.msra.mxu0 0.0
    %1380 = vmatpush.xpose.msra.mxu0 0.0
    %1381 = vmatpush.xpose.msra.mxu0 0.0
    %1382 = vmatpush.xpose.msra.mxu0 0.0
    %1383 = vmatpush.xpose.msra.mxu0 0.0
    %1384 = vmatpush.xpose.msra.mxu0 0.0
    %1385 = vmatpush.xpose.msra.mxu0 0.0
    %1386 = vmatpush.xpose.msra.mxu0 0.0
    %1387 = vmatpush.xpose.msra.mxu0 0.0
    %1388 = vmatpush.xpose.msra.mxu0 0.0
    %1389 = vmatpush.xpose.msra.mxu0 %v1372
    %1390 = vmatmul.f32.gmra.mxu0 %v1370
    %v1391 = vpop.f32.mrf.mxu0
    %v1392 = vadd.f32 0.0, %v1391
    %1393 = vdwg.mxu0
    %v1394 = vmul.f32 %v1392, 0.35355338
    %v1395 = vsel %vm108, %v1394, -inf
    %1396 = vmax.xlane.f32.xlu0 %v1395
    %v1397 = vpop.xlane.xlu0 %1396
    %v1398 = vsub.f32 %v1394, %v1397
    %v1399 = vmul.f32 %v1398, 1.442695
    %v1400 = vpow.pop %v1399
    %v1401 = vsel %vm108, %v1400, 0.0
    %1402 = vadd.xlane.f32.xlu0 %v1401
    %v1403 = vpop.xlane.xlu0 %1402
    %v1404 = vrcp.pop %v1403
    %v1405 = vmul.f32 %v1403, %v1404
    %v1406 = vsub.f32 1.0, %v1405
    %v1407 = vmul.f32 %v1404, %v1406
    %v1408 = vadd.f32 %v1404, %v1407
    %vm1409 = vweird.f32 %v1403
    %vm1410 = vweird.f32 %v1404
    %vm1411 = vmor %vm1409, %vm1410
    %v1412 = vsel %vm1411, %v1404, %v1408
    %v1413 = vand.u32 2147483647, %v1403
    %vm1414 = vcmp.eq.f32.partialorder %v1413, 8.507059e+37
    %v1415 = vand.u32 %v1403, 2147483648
    %v1416 = vor.u32 1.1754944e-38, %v1415
    %v1417 = vsel %vm1414, %v1416, %v1412
    %v1418 = vmul.f32 %v1400, %v1417
    %1419 = vrot.lane.b32.xlu0 %v1034, 64
    %v1420 = vpop.permute.xlu0 %1419
    %v1423 = vsel %vm108, %v1418, 0
    %1425 = vmatpush.msra.mxu0 0.0
    %1426 = vmatpush.msra.mxu0 0.0
    %1427 = vmatpush.msra.mxu0 0.0
    %1428 = vmatpush.msra.mxu0 0.0
    %1429 = vmatpush.msra.mxu0 0.0
    %1430 = vmatpush.msra.mxu0 0.0
    %1431 = vmatpush.msra.mxu0 0.0
    %1432 = vmatpush.msra.mxu0 0.0
    %1433 = vmatpush.msra.mxu0 0.0
    %1434 = vmatpush.msra.mxu0 0.0
    %1435 = vmatpush.msra.mxu0 0.0
    %1436 = vmatpush.msra.mxu0 0.0
    %1437 = vmatpush.msra.mxu0 0.0
    %1438 = vmatpush.msra.mxu0 0.0
    %1439 = vmatpush.msra.mxu0 0.0
    %1440 = vmatpush.msra.mxu0 %v1420
    %1441 = vmatmul.f32.gmra.mxu0 %v1423
    %v1442 = vpop.f32.mrf.mxu0
    %v1443 = vadd.f32 0.0, %v1442
    %1444 = vdwg.mxu0
    %1445 = vst.msk [vmem:[#allocation2 + $0x8] sm:$0xff] %vm108, %v1443
    %1446 = vrot.lane.b32.xlu0 %v1034, 120
    %v1447 = vpop.permute.xlu0 %1446
    %1448 = vrot.lane.b32.xlu0 %v1034, 88
    %v1449 = vpop.permute.xlu0 %1448
    %v1450 = vsel %vm108, %v1447, 0
    %v1452 = vsel %vm108, %v1449, 0
    %1454 = vmatpush.xpose.msra.mxu0 0.0
    %1455 = vmatpush.xpose.msra.mxu0 0.0
    %1456 = vmatpush.xpose.msra.mxu0 0.0
    %1457 = vmatpush.xpose.msra.mxu0 0.0
    %1458 = vmatpush.xpose.msra.mxu0 0.0
    %1459 = vmatpush.xpose.msra.mxu0 0.0
    %1460 = vmatpush.xpose.msra.mxu0 0.0
    %1461 = vmatpush.xpose.msra.mxu0 0.0
    %1462 = vmatpush.xpose.msra.mxu0 0.0
    %1463 = vmatpush.xpose.msra.mxu0 0.0
    %1464 = vmatpush.xpose.msra.mxu0 0.0
    %1465 = vmatpush.xpose.msra.mxu0 0.0
    %1466 = vmatpush.xpose.msra.mxu0 0.0
    %1467 = vmatpush.xpose.msra.mxu0 0.0
    %1468 = vmatpush.xpose.msra.mxu0 0.0
    %1469 = vmatpush.xpose.msra.mxu0 %v1452
    %1470 = vmatmul.f32.gmra.mxu0 %v1450
    %v1471 = vpop.f32.mrf.mxu0
    %v1472 = vadd.f32 0.0, %v1471
    %1473 = vdwg.mxu0
    %v1474 = vmul.f32 %v1472, 0.35355338
    %v1475 = vsel %vm108, %v1474, -inf
    %1476 = vmax.xlane.f32.xlu0 %v1475
    %v1477 = vpop.xlane.xlu0 %1476
    %v1478 = vsub.f32 %v1474, %v1477
    %v1479 = vmul.f32 %v1478, 1.442695
    %v1480 = vpow.pop %v1479
    %v1481 = vsel %vm108, %v1480, 0.0
    %1482 = vadd.xlane.f32.xlu0 %v1481
    %v1483 = vpop.xlane.xlu0 %1482
    %v1484 = vrcp.pop %v1483
    %v1485 = vmul.f32 %v1483, %v1484
    %v1486 = vsub.f32 1.0, %v1485
    %v1487 = vmul.f32 %v1484, %v1486
    %v1488 = vadd.f32 %v1484, %v1487
    %vm1489 = vweird.f32 %v1483
    %vm1490 = vweird.f32 %v1484
    %vm1491 = vmor %vm1489, %vm1490
    %v1492 = vsel %vm1491, %v1484, %v1488
    %v1493 = vand.u32 2147483647, %v1483
    %vm1494 = vcmp.eq.f32.partialorder %v1493, 8.507059e+37
    %v1495 = vand.u32 %v1483, 2147483648
    %v1496 = vor.u32 1.1754944e-38, %v1495
    %v1497 = vsel %vm1494, %v1496, %v1492
    %v1498 = vmul.f32 %v1480, %v1497
    %1499 = vrot.lane.b32.xlu0 %v1034, 56
    %v1500 = vpop.permute.xlu0 %1499
    %v1503 = vsel %vm108, %v1498, 0
    %1505 = vmatpush.msra.mxu0 0.0
    %1506 = vmatpush.msra.mxu0 0.0
    %1507 = vmatpush.msra.mxu0 0.0
    %1508 = vmatpush.msra.mxu0 0.0
    %1509 = vmatpush.msra.mxu0 0.0
    %1510 = vmatpush.msra.mxu0 0.0
    %1511 = vmatpush.msra.mxu0 0.0
    %1512 = vmatpush.msra.mxu0 0.0
    %1513 = vmatpush.msra.mxu0 0.0
    %1514 = vmatpush.msra.mxu0 0.0
    %1515 = vmatpush.msra.mxu0 0.0
    %1516 = vmatpush.msra.mxu0 0.0
    %1517 = vmatpush.msra.mxu0 0.0
    %1518 = vmatpush.msra.mxu0 0.0
    %1519 = vmatpush.msra.mxu0 0.0
    %1520 = vmatpush.msra.mxu0 %v1500
    %1521 = vmatmul.f32.gmra.mxu0 %v1503
    %v1522 = vpop.f32.mrf.mxu0
    %v1523 = vadd.f32 0.0, %v1522
    %1524 = vdwg.mxu0
    %1526 = vrot.lane.b32.xlu0 %v1523, 8
    %v1527 = vpop.permute.xlu0 %1526
    %1529 = vst.msk [vmem:[#allocation2 + $0x8] sm:$0xff] %vm268, %v1527
    %1530 = vrot.lane.b32.xlu0 %v1034, 112
    %v1531 = vpop.permute.xlu0 %1530
    %1532 = vrot.lane.b32.xlu0 %v1034, 80
    %v1533 = vpop.permute.xlu0 %1532
    %v1534 = vsel %vm108, %v1531, 0
    %v1536 = vsel %vm108, %v1533, 0
    %1538 = vmatpush.xpose.msra.mxu0 0.0
    %1539 = vmatpush.xpose.msra.mxu0 0.0
    %1540 = vmatpush.xpose.msra.mxu0 0.0
    %1541 = vmatpush.xpose.msra.mxu0 0.0
    %1542 = vmatpush.xpose.msra.mxu0 0.0
    %1543 = vmatpush.xpose.msra.mxu0 0.0
    %1544 = vmatpush.xpose.msra.mxu0 0.0
    %1545 = vmatpush.xpose.msra.mxu0 0.0
    %1546 = vmatpush.xpose.msra.mxu0 0.0
    %1547 = vmatpush.xpose.msra.mxu0 0.0
    %1548 = vmatpush.xpose.msra.mxu0 0.0
    %1549 = vmatpush.xpose.msra.mxu0 0.0
    %1550 = vmatpush.xpose.msra.mxu0 0.0
    %1551 = vmatpush.xpose.msra.mxu0 0.0
    %1552 = vmatpush.xpose.msra.mxu0 0.0
    %1553 = vmatpush.xpose.msra.mxu0 %v1536
    %1554 = vmatmul.f32.gmra.mxu0 %v1534
    %v1555 = vpop.f32.mrf.mxu0
    %v1556 = vadd.f32 0.0, %v1555
    %1557 = vdwg.mxu0
    %v1558 = vmul.f32 %v1556, 0.35355338
    %v1559 = vsel %vm108, %v1558, -inf
    %1560 = vmax.xlane.f32.xlu0 %v1559
    %v1561 = vpop.xlane.xlu0 %1560
    %v1562 = vsub.f32 %v1558, %v1561
    %v1563 = vmul.f32 %v1562, 1.442695
    %v1564 = vpow.pop %v1563
    %v1565 = vsel %vm108, %v1564, 0.0
    %1566 = vadd.xlane.f32.xlu0 %v1565
    %v1567 = vpop.xlane.xlu0 %1566
    %v1568 = vrcp.pop %v1567
    %v1569 = vmul.f32 %v1567, %v1568
    %v1570 = vsub.f32 1.0, %v1569
    %v1571 = vmul.f32 %v1568, %v1570
    %v1572 = vadd.f32 %v1568, %v1571
    %vm1573 = vweird.f32 %v1567
    %vm1574 = vweird.f32 %v1568
    %vm1575 = vmor %vm1573, %vm1574
    %v1576 = vsel %vm1575, %v1568, %v1572
    %v1577 = vand.u32 2147483647, %v1567
    %vm1578 = vcmp.eq.f32.partialorder %v1577, 8.507059e+37
    %v1579 = vand.u32 %v1567, 2147483648
    %v1580 = vor.u32 1.1754944e-38, %v1579
    %v1581 = vsel %vm1578, %v1580, %v1576
    %v1582 = vmul.f32 %v1564, %v1581
    %1583 = vrot.lane.b32.xlu0 %v1034, 48
    %v1584 = vpop.permute.xlu0 %1583
    %v1587 = vsel %vm108, %v1582, 0
    %1589 = vmatpush.msra.mxu0 0.0
    %1590 = vmatpush.msra.mxu0 0.0
    %1591 = vmatpush.msra.mxu0 0.0
    %1592 = vmatpush.msra.mxu0 0.0
    %1593 = vmatpush.msra.mxu0 0.0
    %1594 = vmatpush.msra.mxu0 0.0
    %1595 = vmatpush.msra.mxu0 0.0
    %1596 = vmatpush.msra.mxu0 0.0
    %1597 = vmatpush.msra.mxu0 0.0
    %1598 = vmatpush.msra.mxu0 0.0
    %1599 = vmatpush.msra.mxu0 0.0
    %1600 = vmatpush.msra.mxu0 0.0
    %1601 = vmatpush.msra.mxu0 0.0
    %1602 = vmatpush.msra.mxu0 0.0
    %1603 = vmatpush.msra.mxu0 0.0
    %1604 = vmatpush.msra.mxu0 %v1584
    %1605 = vmatmul.f32.gmra.mxu0 %v1587
    %v1606 = vpop.f32.mrf.mxu0
    %v1607 = vadd.f32 0.0, %v1606
    %1608 = vdwg.mxu0
    %1610 = vrot.lane.b32.xlu0 %v1607, 16
    %v1611 = vpop.permute.xlu0 %1610
    %1613 = vst.msk [vmem:[#allocation2 + $0x8] sm:$0xff] %vm353, %v1611
    %1614 = vrot.lane.b32.xlu0 %v1034, 104
    %v1615 = vpop.permute.xlu0 %1614
    %1616 = vrot.lane.b32.xlu0 %v1034, 72
    %v1617 = vpop.permute.xlu0 %1616
    %v1618 = vsel %vm108, %v1615, 0
    %v1620 = vsel %vm108, %v1617, 0
    %1622 = vmatpush.xpose.msra.mxu0 0.0
    %1623 = vmatpush.xpose.msra.mxu0 0.0
    %1624 = vmatpush.xpose.msra.mxu0 0.0
    %1625 = vmatpush.xpose.msra.mxu0 0.0
    %1626 = vmatpush.xpose.msra.mxu0 0.0
    %1627 = vmatpush.xpose.msra.mxu0 0.0
    %1628 = vmatpush.xpose.msra.mxu0 0.0
    %1629 = vmatpush.xpose.msra.mxu0 0.0
    %1630 = vmatpush.xpose.msra.mxu0 0.0
    %1631 = vmatpush.xpose.msra.mxu0 0.0
    %1632 = vmatpush.xpose.msra.mxu0 0.0
    %1633 = vmatpush.xpose.msra.mxu0 0.0
    %1634 = vmatpush.xpose.msra.mxu0 0.0
    %1635 = vmatpush.xpose.msra.mxu0 0.0
    %1636 = vmatpush.xpose.msra.mxu0 0.0
    %1637 = vmatpush.xpose.msra.mxu0 %v1620
    %1638 = vmatmul.f32.gmra.mxu0 %v1618
    %v1639 = vpop.f32.mrf.mxu0
    %v1640 = vadd.f32 0.0, %v1639
    %1641 = vdwg.mxu0
    %v1642 = vmul.f32 %v1640, 0.35355338
    %v1643 = vsel %vm108, %v1642, -inf
    %1644 = vmax.xlane.f32.xlu0 %v1643
    %v1645 = vpop.xlane.xlu0 %1644
    %v1646 = vsub.f32 %v1642, %v1645
    %v1647 = vmul.f32 %v1646, 1.442695
    %v1648 = vpow.pop %v1647
    %v1649 = vsel %vm108, %v1648, 0.0
    %1650 = vadd.xlane.f32.xlu0 %v1649
    %v1651 = vpop.xlane.xlu0 %1650
    %v1652 = vrcp.pop %v1651
    %v1653 = vmul.f32 %v1651, %v1652
    %v1654 = vsub.f32 1.0, %v1653
    %v1655 = vmul.f32 %v1652, %v1654
    %v1656 = vadd.f32 %v1652, %v1655
    %vm1657 = vweird.f32 %v1651
    %vm1658 = vweird.f32 %v1652
    %vm1659 = vmor %vm1657, %vm1658
    %v1660 = vsel %vm1659, %v1652, %v1656
    %v1661 = vand.u32 2147483647, %v1651
    %vm1662 = vcmp.eq.f32.partialorder %v1661, 8.507059e+37
    %v1663 = vand.u32 %v1651, 2147483648
    %v1664 = vor.u32 1.1754944e-38, %v1663
    %v1665 = vsel %vm1662, %v1664, %v1660
    %v1666 = vmul.f32 %v1648, %v1665
    %1667 = vrot.lane.b32.xlu0 %v1034, 40
    %v1668 = vpop.permute.xlu0 %1667
    %v1671 = vsel %vm108, %v1666, 0
    %1673 = vmatpush.msra.mxu0 0.0
    %1674 = vmatpush.msra.mxu0 0.0
    %1675 = vmatpush.msra.mxu0 0.0
    %1676 = vmatpush.msra.mxu0 0.0
    %1677 = vmatpush.msra.mxu0 0.0
    %1678 = vmatpush.msra.mxu0 0.0
    %1679 = vmatpush.msra.mxu0 0.0
    %1680 = vmatpush.msra.mxu0 0.0
    %1681 = vmatpush.msra.mxu0 0.0
    %1682 = vmatpush.msra.mxu0 0.0
    %1683 = vmatpush.msra.mxu0 0.0
    %1684 = vmatpush.msra.mxu0 0.0
    %1685 = vmatpush.msra.mxu0 0.0
    %1686 = vmatpush.msra.mxu0 0.0
    %1687 = vmatpush.msra.mxu0 0.0
    %1688 = vmatpush.msra.mxu0 %v1668
    %1689 = vmatmul.f32.gmra.mxu0 %v1671
    %v1690 = vpop.f32.mrf.mxu0
    %v1691 = vadd.f32 0.0, %v1690
    %1692 = vdwg.mxu0
    %1694 = vrot.lane.b32.xlu0 %v1691, 24
    %v1695 = vpop.permute.xlu0 %1694
    %1697 = vst.msk [vmem:[#allocation2 + $0x8] sm:$0xff] %vm438, %v1695
    %v1698 = vld [vmem:[#allocation2] sm:$0xff]
    %v1699 = vld [vmem:[#allocation2 + $0x8] sm:$0xff]
    %v1700 = vperm.slane %v999, 0
    %v1702 = vsel %vm75, %v1698, 0
    %v1705 = vsel %vm75, %v1699, 0
    %1707 = vmatpush.msra.mxu0 0.0
    %1708 = vmatpush.msra.mxu0 0.0
    %1709 = vmatpush.msra.mxu0 0.0
    %1710 = vmatpush.msra.mxu0 0.0
    %1711 = vmatpush.msra.mxu0 0.0
    %1712 = vmatpush.msra.mxu0 0.0
    %1713 = vmatpush.msra.mxu0 0.0
    %1714 = vmatpush.msra.mxu0 0.0
    %1715 = vmatpush.msra.mxu0 0.0
    %1716 = vmatpush.msra.mxu0 0.0
    %1717 = vmatpush.msra.mxu0 0.0
    %1718 = vmatpush.msra.mxu0 0.0
    %1719 = vmatpush.msra.mxu0 %v985
    %1720 = vmatpush.msra.mxu0 %v984
    %1721 = vmatpush.msra.mxu0 %v983
    %1722 = vmatpush.msra.mxu0 %v982
    %1723 = vmatmul.f32.gmra.mxu0 %v1702
    %v1724 = vpop.f32.mrf.mxu0
    %v1725 = vadd.f32 %v1700, %v1724
    %1726 = vmatmul.f32.gmra.mxu0 %v1705
    %v1727 = vpop.f32.mrf.mxu0
    %v1728 = vadd.f32 %v1700, %v1727
    %1729 = vdwg.mxu0
    %v1730 = vadd.f32 %v975, %v1725
    %v1731 = vadd.f32 %v976, %v1728
    %v1732 = vsel %vm75, %v1730, 0.0
    %1733 = vadd.xlane.f32.xlu0 %v1732
    %v1734 = vpop.xlane.xlu0 %1733
    %v1735 = vsel %vm75, %v1731, 0.0
    %1736 = vadd.xlane.f32.xlu0 %v1735
    %v1737 = vpop.xlane.xlu0 %1736
    %v1738 = vmul.f32 %v1734, %v817
    %v1739 = vmul.f32 %v1737, %v817
    %v1740 = vsub.f32 %v1730, %v1738
    %v1741 = vsub.f32 %v1731, %v1739
    %v1742 = vmul.f32 %v1740, %v1740
    %v1743 = vmul.f32 %v1741, %v1741
    %v1744 = vsel %vm75, %v1742, 0.0
    %1745 = vadd.xlane.f32.xlu0 %v1744
    %v1746 = vpop.xlane.xlu0 %1745
    %v1747 = vsel %vm75, %v1743, 0.0
    %1748 = vadd.xlane.f32.xlu0 %v1747
    %v1749 = vpop.xlane.xlu0 %1748
    %v1750 = vmul.f32 %v1746, %v817
    %v1751 = vmul.f32 %v1749, %v817
    %v1752 = vadd.f32 %v1750, 1e-05
    %v1753 = vadd.f32 %v1751, 1e-05
    %v1754 = vrsqrt.pop %v1752
    %v1755 = vmul.f32 %v1754, %v1752
    %v1756 = vmul.f32 %v1755, %v1754
    %v1757 = vmul.f32 0.5, %v1756
    %v1758 = vsub.f32 1.5, %v1757
    %v1759 = vmul.f32 %v1754, %v1758
    %vm1760 = vweird.f32 %v1752
    %vm1761 = vweird.f32 %v1754
    %vm1762 = vmor %vm1760, %vm1761
    %v1763 = vsel %vm1762, %v1754, %v1759
    %v1764 = vrsqrt.pop %v1753
    %v1765 = vmul.f32 %v1764, %v1753
    %v1766 = vmul.f32 %v1765, %v1764
    %v1767 = vmul.f32 0.5, %v1766
    %v1768 = vsub.f32 1.5, %v1767
    %v1769 = vmul.f32 %v1764, %v1768
    %vm1770 = vweird.f32 %v1753
    %vm1771 = vweird.f32 %v1764
    %vm1772 = vmor %vm1770, %vm1771
    %v1773 = vsel %vm1772, %v1764, %v1769
    %v1774 = vmul.f32 %v1740, %v1763
    %v1775 = vmul.f32 %v1741, %v1773
    %v1776 = vperm.slane %v1002, 0
    %v1777 = vmul.f32 %v1774, %v1776
    %v1778 = vmul.f32 %v1775, %v1776
    %v1779 = vperm.slane %v1003, 0
    %v1780 = vadd.f32 %v1777, %v1779
    %v1781 = vadd.f32 %v1778, %v1779
    %v1782 = vperm.slane %v1000, 0
    %v1784 = vsel %vm75, %v1780, 0
    %v1787 = vsel %vm75, %v1781, 0
    %1789 = vmatpush.msra.mxu0 0.0
    %1790 = vmatpush.msra.mxu0 0.0
    %1791 = vmatpush.msra.mxu0 0.0
    %1792 = vmatpush.msra.mxu0 0.0
    %1793 = vmatpush.msra.mxu0 0.0
    %1794 = vmatpush.msra.mxu0 0.0
    %1795 = vmatpush.msra.mxu0 0.0
    %1796 = vmatpush.msra.mxu0 0.0
    %1797 = vmatpush.msra.mxu0 0.0
    %1798 = vmatpush.msra.mxu0 0.0
    %1799 = vmatpush.msra.mxu0 0.0
    %1800 = vmatpush.msra.mxu0 0.0
    %1801 = vmatpush.msra.mxu0 %v989
    %1802 = vmatpush.msra.mxu0 %v988
    %1803 = vmatpush.msra.mxu0 %v987
    %1804 = vmatpush.msra.mxu0 %v986
    %1805 = vmatmul.f32.gmra.mxu0 %v1784
    %v1806 = vpop.f32.mrf.mxu0
    %v1807 = vadd.f32 %v1782, %v1806
    %1808 = vmatmul.f32.gmra.mxu0 %v1787
    %v1809 = vpop.f32.mrf.mxu0
    %v1810 = vadd.f32 %v1782, %v1809
    %1811 = vdwg.mxu0
    %v1812 = vmax.f32 %v1807, 0.0
    %v1813 = vmax.f32 %v1810, 0.0
    %v1814 = vperm.slane %v1001, 0
    %v1816 = vsel %vm895, %v1812, 0
    %v1819 = vsel %vm895, %v1813, 0
    %1821 = vmatpush.msra.mxu0 0.0
    %1822 = vmatpush.msra.mxu0 0.0
    %1823 = vmatpush.msra.mxu0 0.0
    %1824 = vmatpush.msra.mxu0 0.0
    %1825 = vmatpush.msra.mxu0 0.0
    %1826 = vmatpush.msra.mxu0 0.0
    %1827 = vmatpush.msra.mxu0 0.0
    %1828 = vmatpush.msra.mxu0 0.0
    %1829 = vmatpush.msra.mxu0 %v997
    %1830 = vmatpush.msra.mxu0 %v996
    %1831 = vmatpush.msra.mxu0 %v995
    %1832 = vmatpush.msra.mxu0 %v994
    %1833 = vmatpush.msra.mxu0 %v993
    %1834 = vmatpush.msra.mxu0 %v992
    %1835 = vmatpush.msra.mxu0 %v991
    %1836 = vmatpush.msra.mxu0 %v990
    %1837 = vmatmul.f32.gmra.mxu0 %v1816
    %v1838 = vpop.f32.mrf.mxu0
    %v1839 = vadd.f32 %v1814, %v1838
    %1840 = vmatmul.f32.gmra.mxu0 %v1819
    %v1841 = vpop.f32.mrf.mxu0
    %v1842 = vadd.f32 %v1814, %v1841
    %1843 = vdwg.mxu0
    %v1844 = vadd.f32 %v1780, %v1839
    %v1845 = vadd.f32 %v1781, %v1842
    %v1846 = vsel %vm75, %v1844, 0.0
    %1847 = vadd.xlane.f32.xlu0 %v1846
    %v1848 = vpop.xlane.xlu0 %1847
    %v1849 = vsel %vm75, %v1845, 0.0
    %1850 = vadd.xlane.f32.xlu0 %v1849
    %v1851 = vpop.xlane.xlu0 %1850
    %v1852 = vmul.f32 %v1848, %v817
    %v1853 = vmul.f32 %v1851, %v817
    %v1854 = vsub.f32 %v1844, %v1852
    %v1855 = vsub.f32 %v1845, %v1853
    %v1856 = vmul.f32 %v1854, %v1854
    %v1857 = vmul.f32 %v1855, %v1855
    %v1858 = vsel %vm75, %v1856, 0.0
    %1859 = vadd.xlane.f32.xlu0 %v1858
    %v1860 = vpop.xlane.xlu0 %1859
    %v1861 = vsel %vm75, %v1857, 0.0
    %1862 = vadd.xlane.f32.xlu0 %v1861
    %v1863 = vpop.xlane.xlu0 %1862
    %v1864 = vmul.f32 %v1860, %v817
    %v1865 = vmul.f32 %v1863, %v817
    %v1866 = vadd.f32 %v1864, 1e-05
    %v1867 = vadd.f32 %v1865, 1e-05
    %v1868 = vrsqrt.pop %v1866
    %v1869 = vmul.f32 %v1868, %v1866
    %v1870 = vmul.f32 %v1869, %v1868
    %v1871 = vmul.f32 0.5, %v1870
    %v1872 = vsub.f32 1.5, %v1871
    %v1873 = vmul.f32 %v1868, %v1872
    %vm1874 = vweird.f32 %v1866
    %vm1875 = vweird.f32 %v1868
    %vm1876 = vmor %vm1874, %vm1875
    %v1877 = vsel %vm1876, %v1868, %v1873
    %v1878 = vrsqrt.pop %v1867
    %v1879 = vmul.f32 %v1878, %v1867
    %v1880 = vmul.f32 %v1879, %v1878
    %v1881 = vmul.f32 0.5, %v1880
    %v1882 = vsub.f32 1.5, %v1881
    %v1883 = vmul.f32 %v1878, %v1882
    %vm1884 = vweird.f32 %v1867
    %vm1885 = vweird.f32 %v1878
    %vm1886 = vmor %vm1884, %vm1885
    %v1887 = vsel %vm1886, %v1878, %v1883
    %v1888 = vmul.f32 %v1854, %v1877
    %v1889 = vmul.f32 %v1855, %v1887
    %v1890 = vperm.slane %v1004, 0
    %v1891 = vmul.f32 %v1888, %v1890
    %v1892 = vmul.f32 %v1889, %v1890
    %v1893 = vperm.slane %v1005, 0
    %v1894 = vadd.f32 %v1891, %v1893
    %v1895 = vadd.f32 %v1892, %v1893
    %1896 = vst.msk [vmem:[#allocation8] sm:$0xff] %vm75, %v1894
    %1897 = vst.msk [vmem:[#allocation8 + $0x8] sm:$0xff] %vm75, %v1895
    // Predicated region
    $region18: #{transformer_encoder.1} parent=1 // pred_check
      _
    $region19: #{transformer_encoder.1} parent=1 // pred_check_branch
      %1899 = sbr.rel (0) target = $region21
    $region20: #{transformer_encoder.1} parent=1 // pred_region
      %1901 = vsyncadd [#allocation5], 0
      %s1902 = sshll.u32 [#allocation8], 4
      %s1903 = int_to_ptr.vmem [resolvable:$true] %s1902
      %s1904 = sshll.u32 %s2, 4
      %s1905 = int_to_ptr.hbm [resolvable:$true] %s1904
      %1910 = dma.vmem_to_hbm [thread:$0]  %s1903, 256, %s1905, [#allocation5], 128, 128, 8
    $region21: #{transformer_encoder.1} parent=1 // pred_fallthru
      _
    // Predicated region
    $region22: #{transformer_encoder.1} parent=1 // pred_check
      _
    $region23: #{transformer_encoder.1} parent=1 // pred_check_branch
      %1912 = sbr.rel (0) target = $region25
    $region24: #{transformer_encoder.1} parent=1 // pred_region
      %1914 = dma.done [#allocation5], 256
    $region25: #{transformer_encoder.1} parent=1 // pred_fallthru
      _
    %1915 = vsyncpa [#allocation4], 1
    %1916 = vsyncpa [#allocation7], 1
    %1917 = vsyncpa [#allocation5], 1

</llo_original>
